<compile_context>
chip_gen: v7x
topology: tpu7x:2x2x1
jax: 0.10.0
libtpu: 0.0.40
codegen_flags: <defaults>
</compile_context>

<pallas_src>
import functools

import jax
import jax.numpy as jnp
from jax.experimental import pallas as pl
from jax.experimental.pallas import tpu as pltpu

_INV_SQRT2 = 0.7071067811865476


def _gelu_exact(x):
    # torch.nn.GELU() default (approximate='none'): 0.5*x*(1+erf(x/sqrt(2)))
    return 0.5 * x * (1.0 + jax.lax.erf(x * _INV_SQRT2))


def block_kernel(x_ref, ln1w_ref, ln1b_ref, wqkv_ref, wproj_ref, bproj_ref,
                 ln2w_ref, ln2b_ref, wfc1_ref, bfc1_ref, wfc2_ref, bfc2_ref,
                 o_ref, acc_ref, *, num_heads, head_dim, eps=1e-5):
    D = num_heads * head_dim
    cdt = x_ref.dtype                         # MXU operand dtype (== input dtype)
    x = x_ref[0].astype(jnp.float32)          # (N, D) residual stream in f32

    # ---------------- LayerNorm 1 (var = E[x^2] - mu^2) ----------------
    mu = jnp.mean(x, axis=-1, keepdims=True)
    var = jnp.mean(x * x, axis=-1, keepdims=True) - mu * mu
    hn = ((x - mu) * jax.lax.rsqrt(var + eps) * ln1w_ref[...]
          + ln1b_ref[...]).astype(cdt)        # (N, D)

    # ---------------- Attention ------------------
    # One fused, full-width MXU matmul producing qkv TRANSPOSED: (3D, N).
    # (wqkv is stored in PyTorch (out, in) orientation; head_dim**-0.5 is
    #  pre-folded into the Q rows by the wrapper; qkv_bias=False.)
    qkv_t = jax.lax.dot_general(
        wqkv_ref[...], hn, (((1,), (1,)), ((), ())),
        preferred_element_type=jnp.float32).astype(cdt)          # (3D, N)

    # Per-head loop: sublane-dim slices of qkv_t (cheap, hd % 8 == 0), and the
    # per-head projection contribution accumulates into an (N, D) f32 scratch.
    acc_ref[...] = jnp.zeros_like(acc_ref)
    for h in range(num_heads):
        lo = h * head_dim
        qt = qkv_t[lo:lo + head_dim, :]                           # (hd, N) = Q_h^T (pre-scaled)
        kt = qkv_t[D + lo:D + lo + head_dim, :]                   # (hd, N) = K_h^T
        vt = qkv_t[2 * D + lo:2 * D + lo + head_dim, :]           # (hd, N) = V_h^T

        s = jnp.dot(qt.T, kt, preferred_element_type=jnp.float32)  # (N, N)
        s = s - jnp.max(s, axis=-1, keepdims=True)
        p = jnp.exp(s)
        p = p * pl.reciprocal(jnp.sum(p, axis=-1, keepdims=True), approx=True)

        # P_h @ V_h  (trans-B dot_general; V_h = vt.T)
        o_h = jax.lax.dot_general(
            p.astype(cdt), vt, (((1,), (1,)), ((), ())),
            preferred_element_type=jnp.float32).astype(cdt)       # (N, hd)

        # per-head projection (gamma1 pre-folded into wproj_ref)
        acc_ref[...] += jnp.dot(o_h, wproj_ref[h],
                                preferred_element_type=jnp.float32)   # (N, D)

    x1 = x + acc_ref[...] + bproj_ref[...]    # residual 1 (gamma1*bproj pre-folded)

    # ---------------- LayerNorm 2 + MLP ----------
    mu2 = jnp.mean(x1, axis=-1, keepdims=True)
    var2 = jnp.mean(x1 * x1, axis=-1, keepdims=True) - mu2 * mu2
    h2 = ((x1 - mu2) * jax.lax.rsqrt(var2 + eps) * ln2w_ref[...]
          + ln2b_ref[...]).astype(cdt)

    m = jnp.dot(h2, wfc1_ref[...], preferred_element_type=jnp.float32) + bfc1_ref[...]
    m = _gelu_exact(m).astype(cdt)
    y = jnp.dot(m, wfc2_ref[...], preferred_element_type=jnp.float32) + bfc2_ref[...]

    o_ref[0] = (x1 + y).astype(o_ref.dtype)   # residual 2 (gamma2 pre-folded)


def block_forward(x, params, *, num_heads):
    B, N, D = x.shape
    head_dim = D // num_heads
    hidden = params['wfc1'].shape[0]
    cdt = x.dtype                               # compute dtype (bf16 x -> bf16 MXU)
    f32 = jnp.float32
    scale = head_dim ** -0.5

    # ---- offline weight folding (pure preprocessing, keeps semantics) ----
    wqkv = params['wqkv'].astype(f32)
    wqkv = jnp.concatenate([wqkv[:D] * scale, wqkv[D:]], axis=0).astype(cdt)  # (3D, D)

    g1 = params['gamma1'].astype(f32)
    wproj3 = ((params['wproj'].astype(f32) * g1[:, None]).T
              .reshape(num_heads, head_dim, D).astype(cdt))                   # (H, hd, D)
    bproj = (g1 * params['bproj'].astype(f32)).reshape(1, D)

    g2 = params['gamma2'].astype(f32)
    wfc1_t = params['wfc1'].astype(cdt).T                                     # (D, hid)
    bfc1 = params['bfc1'].astype(f32).reshape(1, hidden)
    wfc2_t = (params['wfc2'].astype(f32) * g2[:, None]).T.astype(cdt)         # (hid, D)
    bfc2 = (g2 * params['bfc2'].astype(f32)).reshape(1, D)

    ln1_w = params['ln1_w'].astype(f32).reshape(1, D)
    ln1_b = params['ln1_b'].astype(f32).reshape(1, D)
    ln2_w = params['ln2_w'].astype(f32).reshape(1, D)
    ln2_b = params['ln2_b'].astype(f32).reshape(1, D)

    in_arrays = (x, ln1_w, ln1_b, wqkv, wproj3, bproj,
                 ln2_w, ln2_b, wfc1_t, bfc1, wfc2_t, bfc2)

    def _full_spec(arr):
        return pl.BlockSpec(arr.shape, lambda b, _r=arr.ndim: (0,) * _r)

    in_specs = [pl.BlockSpec((1, N, D), lambda b: (b, 0, 0))]
    in_specs += [_full_spec(a) for a in in_arrays[1:]]

    # scoped-VMEM budget: weights (double-buffered) + activations, clamped.
    itemsize = jnp.dtype(cdt).itemsize
    weight_bytes = itemsize * (3 * D * D + D * D + D * hidden + hidden * D)
    act_bytes = (4 * N * D * 4 + itemsize * 3 * D * N + 4 * N * N + 4 * N * hidden)
    io_bytes = 2 * 2 * N * D * itemsize
    est = 2 * weight_bytes + io_bytes + act_bytes
    vmem_limit = int(min(64 * 2 ** 20, max(32 * 2 ** 20, 2 * est)))

    kern = functools.partial(block_kernel, num_heads=num_heads, head_dim=head_dim)
    return pl.pallas_call(
        kern,
        out_shape=jax.ShapeDtypeStruct((B, N, D), x.dtype),
        grid_spec=pltpu.PrefetchScalarGridSpec(
            num_scalar_prefetch=0,
            grid=(B,),
            in_specs=in_specs,
            out_specs=pl.BlockSpec((1, N, D), lambda b: (b, 0, 0)),
            scratch_shapes=[pltpu.VMEM((N, D), jnp.float32)],   # attn-proj accumulator
        ),
        compiler_params=pltpu.CompilerParams(
            dimension_semantics=("parallel",),
            vmem_limit_bytes=vmem_limit),
    )(*in_arrays)


def block_ref(x, p, *, num_heads):
    """Pure-JAX reference mirroring the PyTorch Block forward exactly."""
    B, N, D = x.shape
    hd = D // num_heads

    def ln(y, w, b):
        mu = y.mean(-1, keepdims=True)
        var = ((y - mu) ** 2).mean(-1, keepdims=True)
        return (y - mu) / jnp.sqrt(var + 1e-5) * w + b

    h = ln(x, p['ln1_w'], p['ln1_b'])
    qkv = h @ p['wqkv'].T                                        # (B, N, 3D)
    qkv = qkv.reshape(B, N, 3, num_heads, hd).transpose(2, 0, 3, 1, 4)
    q, k, v = qkv[0] * hd ** -0.5, qkv[1], qkv[2]                # (B, H, N, hd)
    a = jax.nn.softmax(jnp.einsum('bhqd,bhkd->bhqk', q, k), axis=-1)
    o = jnp.einsum('bhqk,bhkd->bhqd', a, v).transpose(0, 2, 1, 3).reshape(B, N, D)
    o = o @ p['wproj'].T + p['bproj']
    x1 = x + p['gamma1'] * o

    h2 = ln(x1, p['ln2_w'], p['ln2_b'])
    m = jax.nn.gelu(h2 @ p['wfc1'].T + p['bfc1'], approximate=False)
    m = m @ p['wfc2'].T + p['bfc2']
    return x1 + p['gamma2'] * m


def init_params(key, dim, num_heads, mlp_ratio=4.0, init_values=0.1):
    """PyTorch-oriented params: nn.Linear weights are (out_features, in_features)."""
    hidden = int(dim * mlp_ratio)
    ks = jax.random.split(key, 8)
    std = 0.02
    return {
        'ln1_w':  jnp.ones((dim,), jnp.float32),
        'ln1_b':  jnp.zeros((dim,), jnp.float32),
        'wqkv':   std * jax.random.normal(ks[0], (3 * dim, dim), jnp.float32),
        'wproj':  std * jax.random.normal(ks[1], (dim, dim), jnp.float32),
        'bproj':  0.01 * jax.random.normal(ks[2], (dim,), jnp.float32),
        'ln2_w':  jnp.ones((dim,), jnp.float32),
        'ln2_b':  jnp.zeros((dim,), jnp.float32),
        'wfc1':   std * jax.random.normal(ks[3], (hidden, dim), jnp.float32),
        'bfc1':   0.01 * jax.random.normal(ks[4], (hidden,), jnp.float32),
        'wfc2':   std * jax.random.normal(ks[5], (dim, hidden), jnp.float32),
        'bfc2':   0.01 * jax.random.normal(ks[6], (dim,), jnp.float32),
        'gamma1': init_values * jnp.ones((dim,), jnp.float32),
        'gamma2': init_values * jnp.ones((dim,), jnp.float32),
    }


if __name__ == "__main__":
    B, N, DIM, HEADS = 2, 8, 32, 4
    key = jax.random.PRNGKey(0)
    kx, kp = jax.random.split(key)
    x = jax.random.normal(kx, (B, N, DIM), jnp.float32)
    params = init_params(kp, DIM, HEADS, mlp_ratio=4.0, init_values=0.1)

    out = jax.block_until_ready(block_forward(x, params, num_heads=HEADS))
    ref = block_ref(x, params, num_heads=HEADS)

    assert out.shape == (B, N, DIM)
    # tolerance covers pl.reciprocal(approx=True) in the softmax normalization
    err = float(jnp.max(jnp.abs(out - ref)))
    assert jnp.allclose(out, ref, rtol=5e-3, atol=5e-3), err
    print("KERNEL_OK")
</pallas_src>

<mosaic_0001>
module attributes {stable_mosaic.version = 11 : i64} {
  func.func @block_kernel(%arg0: i32, %arg1: memref<1x8x32xf32, #tpu.memory_space<vmem>>, %arg2: memref<1x32xf32, #tpu.memory_space<vmem>>, %arg3: memref<1x32xf32, #tpu.memory_space<vmem>>, %arg4: memref<96x32xf32, #tpu.memory_space<vmem>>, %arg5: memref<4x8x32xf32, #tpu.memory_space<vmem>>, %arg6: memref<1x32xf32, #tpu.memory_space<vmem>>, %arg7: memref<1x32xf32, #tpu.memory_space<vmem>>, %arg8: memref<1x32xf32, #tpu.memory_space<vmem>>, %arg9: memref<32x128xf32, #tpu.memory_space<vmem>>, %arg10: memref<1x128xf32, #tpu.memory_space<vmem>>, %arg11: memref<128x32xf32, #tpu.memory_space<vmem>>, %arg12: memref<1x32xf32, #tpu.memory_space<vmem>>, %arg13: memref<1x8x32xf32, #tpu.memory_space<vmem>>, %arg14: memref<8x32xf32, #tpu.memory_space<vmem>>) attributes {dimension_semantics = [#tpu.dimension_semantics<parallel>], iteration_bounds = array<i64: 2>, scalar_prefetch = 0 : i64, scratch_operands = 1 : i64, tpu.core_type = #tpu.core_type<tc>, window_params = [{transform_indices = @transform_0, window_bounds = array<i64: 1, 8, 32>}, {pipeline_mode = #tpu.pipeline_mode<synchronous>, transform_indices = @transform_1, window_bounds = array<i64: 1, 32>}, {pipeline_mode = #tpu.pipeline_mode<synchronous>, transform_indices = @transform_2, window_bounds = array<i64: 1, 32>}, {pipeline_mode = #tpu.pipeline_mode<synchronous>, transform_indices = @transform_3, window_bounds = array<i64: 96, 32>}, {pipeline_mode = #tpu.pipeline_mode<synchronous>, transform_indices = @transform_4, window_bounds = array<i64: 4, 8, 32>}, {pipeline_mode = #tpu.pipeline_mode<synchronous>, transform_indices = @transform_5, window_bounds = array<i64: 1, 32>}, {pipeline_mode = #tpu.pipeline_mode<synchronous>, transform_indices = @transform_6, window_bounds = array<i64: 1, 32>}, {pipeline_mode = #tpu.pipeline_mode<synchronous>, transform_indices = @transform_7, window_bounds = array<i64: 1, 32>}, {pipeline_mode = #tpu.pipeline_mode<synchronous>, transform_indices = @transform_8, window_bounds = array<i64: 32, 128>}, {pipeline_mode = #tpu.pipeline_mode<synchronous>, transform_indices = @transform_9, window_bounds = array<i64: 1, 128>}, {pipeline_mode = #tpu.pipeline_mode<synchronous>, transform_indices = @transform_10, window_bounds = array<i64: 128, 32>}, {pipeline_mode = #tpu.pipeline_mode<synchronous>, transform_indices = @transform_11, window_bounds = array<i64: 1, 32>}, {transform_indices = @transform_12, window_bounds = array<i64: 1, 8, 32>}]} {
    %c0 = arith.constant 0 : index
    %c0_0 = arith.constant 0 : index
    %c0_1 = arith.constant 0 : index
    %0 = vector.load %arg1[%c0, %c0_0, %c0_1] : memref<1x8x32xf32, #tpu.memory_space<vmem>>, vector<1x8x32xf32>
    %1 = vector.shape_cast %0 : vector<1x8x32xf32> to vector<8x32xf32>
    %cst = arith.constant dense<0.000000e+00> : vector<8xf32>
    %2 = vector.multi_reduction <add>, %1, %cst [1] : vector<8x32xf32> to vector<8xf32>
    %3 = vector.shape_cast %2 : vector<8xf32> to vector<8x1xf32>
    %cst_2 = arith.constant 3.200000e+01 : f32
    %4 = vector.broadcast %cst_2 : f32 to vector<8x1xf32>
    %5 = arith.divf %3, %4 : vector<8x1xf32>
    %6 = arith.mulf %1, %1 : vector<8x32xf32>
    %cst_3 = arith.constant dense<0.000000e+00> : vector<8xf32>
    %7 = vector.multi_reduction <add>, %6, %cst_3 [1] : vector<8x32xf32> to vector<8xf32>
    %8 = vector.shape_cast %7 : vector<8xf32> to vector<8x1xf32>
    %cst_4 = arith.constant 3.200000e+01 : f32
    %9 = vector.broadcast %cst_4 : f32 to vector<8x1xf32>
    %10 = arith.divf %8, %9 : vector<8x1xf32>
    %11 = arith.mulf %5, %5 : vector<8x1xf32>
    %12 = arith.subf %10, %11 : vector<8x1xf32>
    %13 = vector.broadcast %5 : vector<8x1xf32> to vector<8x32xf32>
    %14 = arith.subf %1, %13 : vector<8x32xf32>
    %cst_5 = arith.constant 9.99999974E-6 : f32
    %15 = vector.broadcast %cst_5 : f32 to vector<8x1xf32>
    %16 = arith.addf %12, %15 : vector<8x1xf32>
    %17 = math.rsqrt %16 : vector<8x1xf32>
    %18 = vector.broadcast %17 : vector<8x1xf32> to vector<8x32xf32>
    %19 = arith.mulf %14, %18 : vector<8x32xf32>
    %c0_6 = arith.constant 0 : index
    %c0_7 = arith.constant 0 : index
    %20 = vector.load %arg2[%c0_6, %c0_7] : memref<1x32xf32, #tpu.memory_space<vmem>>, vector<1x32xf32>
    %21 = vector.broadcast %20 : vector<1x32xf32> to vector<8x32xf32>
    %22 = arith.mulf %19, %21 : vector<8x32xf32>
    %c0_8 = arith.constant 0 : index
    %c0_9 = arith.constant 0 : index
    %23 = vector.load %arg3[%c0_8, %c0_9] : memref<1x32xf32, #tpu.memory_space<vmem>>, vector<1x32xf32>
    %24 = vector.broadcast %23 : vector<1x32xf32> to vector<8x32xf32>
    %25 = arith.addf %22, %24 : vector<8x32xf32>
    %c0_10 = arith.constant 0 : index
    %c0_11 = arith.constant 0 : index
    %26 = vector.load %arg4[%c0_10, %c0_11] : memref<96x32xf32, #tpu.memory_space<vmem>>, vector<96x32xf32>
    %cst_12 = arith.constant dense<0.000000e+00> : vector<96x8xf32>
    %27 = tpu.matmul %26, %25, %cst_12 {dimension_numbers = #tpu.dot_dimension_numbers<[1], [1], [0], [0], [0, 0, 1, 0], [], []>} : vector<96x32xf32>, vector<8x32xf32>, vector<96x8xf32> -> vector<96x8xf32>
    %cst_13 = arith.constant 0.000000e+00 : f32
    %28 = vector.broadcast %cst_13 : f32 to vector<8x32xf32>
    %c0_14 = arith.constant 0 : index
    %c0_15 = arith.constant 0 : index
    %29 = vector.load %arg14[%c0_14, %c0_15] : memref<8x32xf32, #tpu.memory_space<vmem>>, vector<8x32xf32>
    tpu.vector_store %arg14[%c0_14, %c0_15], %28 {strides = array<i32>} : memref<8x32xf32, #tpu.memory_space<vmem>>, vector<8x32xf32>,
    %30 = vector.extract_strided_slice %27 {offsets = [0, 0], sizes = [8, 8], strides = [1, 1]} : vector<96x8xf32> to vector<8x8xf32>
    %31 = vector.extract_strided_slice %27 {offsets = [32, 0], sizes = [8, 8], strides = [1, 1]} : vector<96x8xf32> to vector<8x8xf32>
    %32 = vector.extract_strided_slice %27 {offsets = [64, 0], sizes = [8, 8], strides = [1, 1]} : vector<96x8xf32> to vector<8x8xf32>
    %33 = tpu.transpose %30, [1, 0] : vector<8x8xf32> -> vector<8x8xf32>
    %cst_16 = arith.constant dense<0.000000e+00> : vector<8x8xf32>
    %34 = tpu.matmul %33, %31, %cst_16 {dimension_numbers = #tpu.dot_dimension_numbers<[1], [0], [0], [1], [0, 0, 1, 1], [], []>} : vector<8x8xf32>, vector<8x8xf32>, vector<8x8xf32> -> vector<8x8xf32>
    %cst_17 = arith.constant dense<0xFF800000> : vector<8xf32>
    %35 = vector.multi_reduction <maximumf>, %34, %cst_17 [1] : vector<8x8xf32> to vector<8xf32>
    %36 = vector.shape_cast %35 : vector<8xf32> to vector<8x1xf32>
    %37 = vector.broadcast %36 : vector<8x1xf32> to vector<8x8xf32>
    %38 = arith.subf %34, %37 : vector<8x8xf32>
    %39 = math.exp %38 : vector<8x8xf32>
    %cst_18 = arith.constant dense<0.000000e+00> : vector<8xf32>
    %40 = vector.multi_reduction <add>, %39, %cst_18 [1] : vector<8x8xf32> to vector<8xf32>
    %41 = vector.shape_cast %40 : vector<8xf32> to vector<8x1xf32>
    %42 = tpu.reciprocal %41 {approx = true} : vector<8x1xf32> -> vector<8x1xf32>
    %43 = vector.broadcast %42 : vector<8x1xf32> to vector<8x8xf32>
    %44 = arith.mulf %39, %43 : vector<8x8xf32>
    %cst_19 = arith.constant dense<0.000000e+00> : vector<8x8xf32>
    %45 = tpu.matmul %44, %32, %cst_19 {dimension_numbers = #tpu.dot_dimension_numbers<[1], [1], [0], [0], [0, 0, 1, 0], [], []>} : vector<8x8xf32>, vector<8x8xf32>, vector<8x8xf32> -> vector<8x8xf32>
    %c0_20 = arith.constant 0 : index
    %c0_21 = arith.constant 0 : index
    %46 = vector.load %arg14[%c0_20, %c0_21] : memref<8x32xf32, #tpu.memory_space<vmem>>, vector<8x32xf32>
    %c0_22 = arith.constant 0 : index
    %c0_23 = arith.constant 0 : index
    %c0_24 = arith.constant 0 : index
    %47 = vector.load %arg5[%c0_22, %c0_23, %c0_24] : memref<4x8x32xf32, #tpu.memory_space<vmem>>, vector<1x8x32xf32>
    %48 = vector.shape_cast %47 : vector<1x8x32xf32> to vector<8x32xf32>
    %cst_25 = arith.constant dense<0.000000e+00> : vector<8x32xf32>
    %49 = tpu.matmul %45, %48, %cst_25 {dimension_numbers = #tpu.dot_dimension_numbers<[1], [0], [0], [1], [0, 0, 1, 1], [], []>} : vector<8x8xf32>, vector<8x32xf32>, vector<8x32xf32> -> vector<8x32xf32>
    %50 = arith.addf %46, %49 : vector<8x32xf32>
    %c0_26 = arith.constant 0 : index
    %c0_27 = arith.constant 0 : index
    %51 = vector.load %arg14[%c0_26, %c0_27] : memref<8x32xf32, #tpu.memory_space<vmem>>, vector<8x32xf32>
    tpu.vector_store %arg14[%c0_26, %c0_27], %50 {strides = array<i32>} : memref<8x32xf32, #tpu.memory_space<vmem>>, vector<8x32xf32>,
    %52 = vector.extract_strided_slice %27 {offsets = [8, 0], sizes = [8, 8], strides = [1, 1]} : vector<96x8xf32> to vector<8x8xf32>
    %53 = vector.extract_strided_slice %27 {offsets = [40, 0], sizes = [8, 8], strides = [1, 1]} : vector<96x8xf32> to vector<8x8xf32>
    %54 = vector.extract_strided_slice %27 {offsets = [72, 0], sizes = [8, 8], strides = [1, 1]} : vector<96x8xf32> to vector<8x8xf32>
    %55 = tpu.transpose %52, [1, 0] : vector<8x8xf32> -> vector<8x8xf32>
    %cst_28 = arith.constant dense<0.000000e+00> : vector<8x8xf32>
    %56 = tpu.matmul %55, %53, %cst_28 {dimension_numbers = #tpu.dot_dimension_numbers<[1], [0], [0], [1], [0, 0, 1, 1], [], []>} : vector<8x8xf32>, vector<8x8xf32>, vector<8x8xf32> -> vector<8x8xf32>
    %cst_29 = arith.constant dense<0xFF800000> : vector<8xf32>
    %57 = vector.multi_reduction <maximumf>, %56, %cst_29 [1] : vector<8x8xf32> to vector<8xf32>
    %58 = vector.shape_cast %57 : vector<8xf32> to vector<8x1xf32>
    %59 = vector.broadcast %58 : vector<8x1xf32> to vector<8x8xf32>
    %60 = arith.subf %56, %59 : vector<8x8xf32>
    %61 = math.exp %60 : vector<8x8xf32>
    %cst_30 = arith.constant dense<0.000000e+00> : vector<8xf32>
    %62 = vector.multi_reduction <add>, %61, %cst_30 [1] : vector<8x8xf32> to vector<8xf32>
    %63 = vector.shape_cast %62 : vector<8xf32> to vector<8x1xf32>
    %64 = tpu.reciprocal %63 {approx = true} : vector<8x1xf32> -> vector<8x1xf32>
    %65 = vector.broadcast %64 : vector<8x1xf32> to vector<8x8xf32>
    %66 = arith.mulf %61, %65 : vector<8x8xf32>
    %cst_31 = arith.constant dense<0.000000e+00> : vector<8x8xf32>
    %67 = tpu.matmul %66, %54, %cst_31 {dimension_numbers = #tpu.dot_dimension_numbers<[1], [1], [0], [0], [0, 0, 1, 0], [], []>} : vector<8x8xf32>, vector<8x8xf32>, vector<8x8xf32> -> vector<8x8xf32>
    %c0_32 = arith.constant 0 : index
    %c0_33 = arith.constant 0 : index
    %68 = vector.load %arg14[%c0_32, %c0_33] : memref<8x32xf32, #tpu.memory_space<vmem>>, vector<8x32xf32>
    %c1 = arith.constant 1 : index
    %c0_34 = arith.constant 0 : index
    %c0_35 = arith.constant 0 : index
    %69 = vector.load %arg5[%c1, %c0_34, %c0_35] : memref<4x8x32xf32, #tpu.memory_space<vmem>>, vector<1x8x32xf32>
    %70 = vector.shape_cast %69 : vector<1x8x32xf32> to vector<8x32xf32>
    %cst_36 = arith.constant dense<0.000000e+00> : vector<8x32xf32>
    %71 = tpu.matmul %67, %70, %cst_36 {dimension_numbers = #tpu.dot_dimension_numbers<[1], [0], [0], [1], [0, 0, 1, 1], [], []>} : vector<8x8xf32>, vector<8x32xf32>, vector<8x32xf32> -> vector<8x32xf32>
    %72 = arith.addf %68, %71 : vector<8x32xf32>
    %c0_37 = arith.constant 0 : index
    %c0_38 = arith.constant 0 : index
    %73 = vector.load %arg14[%c0_37, %c0_38] : memref<8x32xf32, #tpu.memory_space<vmem>>, vector<8x32xf32>
    tpu.vector_store %arg14[%c0_37, %c0_38], %72 {strides = array<i32>} : memref<8x32xf32, #tpu.memory_space<vmem>>, vector<8x32xf32>,
    %74 = vector.extract_strided_slice %27 {offsets = [16, 0], sizes = [8, 8], strides = [1, 1]} : vector<96x8xf32> to vector<8x8xf32>
    %75 = vector.extract_strided_slice %27 {offsets = [48, 0], sizes = [8, 8], strides = [1, 1]} : vector<96x8xf32> to vector<8x8xf32>
    %76 = vector.extract_strided_slice %27 {offsets = [80, 0], sizes = [8, 8], strides = [1, 1]} : vector<96x8xf32> to vector<8x8xf32>
    %77 = tpu.transpose %74, [1, 0] : vector<8x8xf32> -> vector<8x8xf32>
    %cst_39 = arith.constant dense<0.000000e+00> : vector<8x8xf32>
    %78 = tpu.matmul %77, %75, %cst_39 {dimension_numbers = #tpu.dot_dimension_numbers<[1], [0], [0], [1], [0, 0, 1, 1], [], []>} : vector<8x8xf32>, vector<8x8xf32>, vector<8x8xf32> -> vector<8x8xf32>
    %cst_40 = arith.constant dense<0xFF800000> : vector<8xf32>
    %79 = vector.multi_reduction <maximumf>, %78, %cst_40 [1] : vector<8x8xf32> to vector<8xf32>
    %80 = vector.shape_cast %79 : vector<8xf32> to vector<8x1xf32>
    %81 = vector.broadcast %80 : vector<8x1xf32> to vector<8x8xf32>
    %82 = arith.subf %78, %81 : vector<8x8xf32>
    %83 = math.exp %82 : vector<8x8xf32>
    %cst_41 = arith.constant dense<0.000000e+00> : vector<8xf32>
    %84 = vector.multi_reduction <add>, %83, %cst_41 [1] : vector<8x8xf32> to vector<8xf32>
    %85 = vector.shape_cast %84 : vector<8xf32> to vector<8x1xf32>
    %86 = tpu.reciprocal %85 {approx = true} : vector<8x1xf32> -> vector<8x1xf32>
    %87 = vector.broadcast %86 : vector<8x1xf32> to vector<8x8xf32>
    %88 = arith.mulf %83, %87 : vector<8x8xf32>
    %cst_42 = arith.constant dense<0.000000e+00> : vector<8x8xf32>
    %89 = tpu.matmul %88, %76, %cst_42 {dimension_numbers = #tpu.dot_dimension_numbers<[1], [1], [0], [0], [0, 0, 1, 0], [], []>} : vector<8x8xf32>, vector<8x8xf32>, vector<8x8xf32> -> vector<8x8xf32>
    %c0_43 = arith.constant 0 : index
    %c0_44 = arith.constant 0 : index
    %90 = vector.load %arg14[%c0_43, %c0_44] : memref<8x32xf32, #tpu.memory_space<vmem>>, vector<8x32xf32>
    %c2 = arith.constant 2 : index
    %c0_45 = arith.constant 0 : index
    %c0_46 = arith.constant 0 : index
    %91 = vector.load %arg5[%c2, %c0_45, %c0_46] : memref<4x8x32xf32, #tpu.memory_space<vmem>>, vector<1x8x32xf32>
    %92 = vector.shape_cast %91 : vector<1x8x32xf32> to vector<8x32xf32>
    %cst_47 = arith.constant dense<0.000000e+00> : vector<8x32xf32>
    %93 = tpu.matmul %89, %92, %cst_47 {dimension_numbers = #tpu.dot_dimension_numbers<[1], [0], [0], [1], [0, 0, 1, 1], [], []>} : vector<8x8xf32>, vector<8x32xf32>, vector<8x32xf32> -> vector<8x32xf32>
    %94 = arith.addf %90, %93 : vector<8x32xf32>
    %c0_48 = arith.constant 0 : index
    %c0_49 = arith.constant 0 : index
    %95 = vector.load %arg14[%c0_48, %c0_49] : memref<8x32xf32, #tpu.memory_space<vmem>>, vector<8x32xf32>
    tpu.vector_store %arg14[%c0_48, %c0_49], %94 {strides = array<i32>} : memref<8x32xf32, #tpu.memory_space<vmem>>, vector<8x32xf32>,
    %96 = vector.extract_strided_slice %27 {offsets = [24, 0], sizes = [8, 8], strides = [1, 1]} : vector<96x8xf32> to vector<8x8xf32>
    %97 = vector.extract_strided_slice %27 {offsets = [56, 0], sizes = [8, 8], strides = [1, 1]} : vector<96x8xf32> to vector<8x8xf32>
    %98 = vector.extract_strided_slice %27 {offsets = [88, 0], sizes = [8, 8], strides = [1, 1]} : vector<96x8xf32> to vector<8x8xf32>
    %99 = tpu.transpose %96, [1, 0] : vector<8x8xf32> -> vector<8x8xf32>
    %cst_50 = arith.constant dense<0.000000e+00> : vector<8x8xf32>
    %100 = tpu.matmul %99, %97, %cst_50 {dimension_numbers = #tpu.dot_dimension_numbers<[1], [0], [0], [1], [0, 0, 1, 1], [], []>} : vector<8x8xf32>, vector<8x8xf32>, vector<8x8xf32> -> vector<8x8xf32>
    %cst_51 = arith.constant dense<0xFF800000> : vector<8xf32>
    %101 = vector.multi_reduction <maximumf>, %100, %cst_51 [1] : vector<8x8xf32> to vector<8xf32>
    %102 = vector.shape_cast %101 : vector<8xf32> to vector<8x1xf32>
    %103 = vector.broadcast %102 : vector<8x1xf32> to vector<8x8xf32>
    %104 = arith.subf %100, %103 : vector<8x8xf32>
    %105 = math.exp %104 : vector<8x8xf32>
    %cst_52 = arith.constant dense<0.000000e+00> : vector<8xf32>
    %106 = vector.multi_reduction <add>, %105, %cst_52 [1] : vector<8x8xf32> to vector<8xf32>
    %107 = vector.shape_cast %106 : vector<8xf32> to vector<8x1xf32>
    %108 = tpu.reciprocal %107 {approx = true} : vector<8x1xf32> -> vector<8x1xf32>
    %109 = vector.broadcast %108 : vector<8x1xf32> to vector<8x8xf32>
    %110 = arith.mulf %105, %109 : vector<8x8xf32>
    %cst_53 = arith.constant dense<0.000000e+00> : vector<8x8xf32>
    %111 = tpu.matmul %110, %98, %cst_53 {dimension_numbers = #tpu.dot_dimension_numbers<[1], [1], [0], [0], [0, 0, 1, 0], [], []>} : vector<8x8xf32>, vector<8x8xf32>, vector<8x8xf32> -> vector<8x8xf32>
    %c0_54 = arith.constant 0 : index
    %c0_55 = arith.constant 0 : index
    %112 = vector.load %arg14[%c0_54, %c0_55] : memref<8x32xf32, #tpu.memory_space<vmem>>, vector<8x32xf32>
    %c3 = arith.constant 3 : index
    %c0_56 = arith.constant 0 : index
    %c0_57 = arith.constant 0 : index
    %113 = vector.load %arg5[%c3, %c0_56, %c0_57] : memref<4x8x32xf32, #tpu.memory_space<vmem>>, vector<1x8x32xf32>
    %114 = vector.shape_cast %113 : vector<1x8x32xf32> to vector<8x32xf32>
    %cst_58 = arith.constant dense<0.000000e+00> : vector<8x32xf32>
    %115 = tpu.matmul %111, %114, %cst_58 {dimension_numbers = #tpu.dot_dimension_numbers<[1], [0], [0], [1], [0, 0, 1, 1], [], []>} : vector<8x8xf32>, vector<8x32xf32>, vector<8x32xf32> -> vector<8x32xf32>
    %116 = arith.addf %112, %115 : vector<8x32xf32>
    %c0_59 = arith.constant 0 : index
    %c0_60 = arith.constant 0 : index
    %117 = vector.load %arg14[%c0_59, %c0_60] : memref<8x32xf32, #tpu.memory_space<vmem>>, vector<8x32xf32>
    tpu.vector_store %arg14[%c0_59, %c0_60], %116 {strides = array<i32>} : memref<8x32xf32, #tpu.memory_space<vmem>>, vector<8x32xf32>,
    %c0_61 = arith.constant 0 : index
    %c0_62 = arith.constant 0 : index
    %118 = vector.load %arg14[%c0_61, %c0_62] : memref<8x32xf32, #tpu.memory_space<vmem>>, vector<8x32xf32>
    %119 = arith.addf %1, %118 : vector<8x32xf32>
    %c0_63 = arith.constant 0 : index
    %c0_64 = arith.constant 0 : index
    %120 = vector.load %arg6[%c0_63, %c0_64] : memref<1x32xf32, #tpu.memory_space<vmem>>, vector<1x32xf32>
    %121 = vector.broadcast %120 : vector<1x32xf32> to vector<8x32xf32>
    %122 = arith.addf %119, %121 : vector<8x32xf32>
    %cst_65 = arith.constant dense<0.000000e+00> : vector<8xf32>
    %123 = vector.multi_reduction <add>, %122, %cst_65 [1] : vector<8x32xf32> to vector<8xf32>
    %124 = vector.shape_cast %123 : vector<8xf32> to vector<8x1xf32>
    %cst_66 = arith.constant 3.200000e+01 : f32
    %125 = vector.broadcast %cst_66 : f32 to vector<8x1xf32>
    %126 = arith.divf %124, %125 : vector<8x1xf32>
    %127 = arith.mulf %122, %122 : vector<8x32xf32>
    %cst_67 = arith.constant dense<0.000000e+00> : vector<8xf32>
    %128 = vector.multi_reduction <add>, %127, %cst_67 [1] : vector<8x32xf32> to vector<8xf32>
    %129 = vector.shape_cast %128 : vector<8xf32> to vector<8x1xf32>
    %cst_68 = arith.constant 3.200000e+01 : f32
    %130 = vector.broadcast %cst_68 : f32 to vector<8x1xf32>
    %131 = arith.divf %129, %130 : vector<8x1xf32>
    %132 = arith.mulf %126, %126 : vector<8x1xf32>
    %133 = arith.subf %131, %132 : vector<8x1xf32>
    %134 = vector.broadcast %126 : vector<8x1xf32> to vector<8x32xf32>
    %135 = arith.subf %122, %134 : vector<8x32xf32>
    %cst_69 = arith.constant 9.99999974E-6 : f32
    %136 = vector.broadcast %cst_69 : f32 to vector<8x1xf32>
    %137 = arith.addf %133, %136 : vector<8x1xf32>
    %138 = math.rsqrt %137 : vector<8x1xf32>
    %139 = vector.broadcast %138 : vector<8x1xf32> to vector<8x32xf32>
    %140 = arith.mulf %135, %139 : vector<8x32xf32>
    %c0_70 = arith.constant 0 : index
    %c0_71 = arith.constant 0 : index
    %141 = vector.load %arg7[%c0_70, %c0_71] : memref<1x32xf32, #tpu.memory_space<vmem>>, vector<1x32xf32>
    %142 = vector.broadcast %141 : vector<1x32xf32> to vector<8x32xf32>
    %143 = arith.mulf %140, %142 : vector<8x32xf32>
    %c0_72 = arith.constant 0 : index
    %c0_73 = arith.constant 0 : index
    %144 = vector.load %arg8[%c0_72, %c0_73] : memref<1x32xf32, #tpu.memory_space<vmem>>, vector<1x32xf32>
    %145 = vector.broadcast %144 : vector<1x32xf32> to vector<8x32xf32>
    %146 = arith.addf %143, %145 : vector<8x32xf32>
    %c0_74 = arith.constant 0 : index
    %c0_75 = arith.constant 0 : index
    %147 = vector.load %arg9[%c0_74, %c0_75] : memref<32x128xf32, #tpu.memory_space<vmem>>, vector<32x128xf32>
    %cst_76 = arith.constant dense<0.000000e+00> : vector<8x128xf32>
    %148 = tpu.matmul %146, %147, %cst_76 {dimension_numbers = #tpu.dot_dimension_numbers<[1], [0], [0], [1], [0, 0, 1, 1], [], []>} : vector<8x32xf32>, vector<32x128xf32>, vector<8x128xf32> -> vector<8x128xf32>
    %c0_77 = arith.constant 0 : index
    %c0_78 = arith.constant 0 : index
    %149 = vector.load %arg10[%c0_77, %c0_78] : memref<1x128xf32, #tpu.memory_space<vmem>>, vector<1x128xf32>
    %150 = vector.broadcast %149 : vector<1x128xf32> to vector<8x128xf32>
    %151 = arith.addf %148, %150 : vector<8x128xf32>
    %cst_79 = arith.constant 5.000000e-01 : f32
    %152 = vector.broadcast %cst_79 : f32 to vector<8x128xf32>
    %153 = arith.mulf %152, %151 : vector<8x128xf32>
    %cst_80 = arith.constant 0.707106769 : f32
    %154 = vector.broadcast %cst_80 : f32 to vector<8x128xf32>
    %155 = arith.mulf %151, %154 : vector<8x128xf32>
    %156 = math.erf %155 : vector<8x128xf32>
    %cst_81 = arith.constant 1.000000e+00 : f32
    %157 = vector.broadcast %cst_81 : f32 to vector<8x128xf32>
    %158 = arith.addf %157, %156 : vector<8x128xf32>
    %159 = arith.mulf %153, %158 : vector<8x128xf32>
    %c0_82 = arith.constant 0 : index
    %c0_83 = arith.constant 0 : index
    %160 = vector.load %arg11[%c0_82, %c0_83] : memref<128x32xf32, #tpu.memory_space<vmem>>, vector<128x32xf32>
    %cst_84 = arith.constant dense<0.000000e+00> : vector<8x32xf32>
    %161 = tpu.matmul %159, %160, %cst_84 {dimension_numbers = #tpu.dot_dimension_numbers<[1], [0], [0], [1], [0, 0, 1, 1], [], []>} : vector<8x128xf32>, vector<128x32xf32>, vector<8x32xf32> -> vector<8x32xf32>
    %c0_85 = arith.constant 0 : index
    %c0_86 = arith.constant 0 : index
    %162 = vector.load %arg12[%c0_85, %c0_86] : memref<1x32xf32, #tpu.memory_space<vmem>>, vector<1x32xf32>
    %163 = vector.broadcast %162 : vector<1x32xf32> to vector<8x32xf32>
    %164 = arith.addf %161, %163 : vector<8x32xf32>
    %165 = arith.addf %122, %164 : vector<8x32xf32>
    %c0_87 = arith.constant 0 : index
    %c0_88 = arith.constant 0 : index
    %c0_89 = arith.constant 0 : index
    %166 = vector.load %arg13[%c0_87, %c0_88, %c0_89] : memref<1x8x32xf32, #tpu.memory_space<vmem>>, vector<1x8x32xf32>
    %167 = vector.shape_cast %166 : vector<1x8x32xf32> to vector<8x32xf32>
    %168 = vector.shape_cast %165 : vector<8x32xf32> to vector<1x8x32xf32>
    tpu.vector_store %arg13[%c0_87, %c0_88, %c0_89], %168 {strides = array<i32>} : memref<1x8x32xf32, #tpu.memory_space<vmem>>, vector<1x8x32xf32>,
    return
  }
  func.func @transform_0(%arg0: i32) -> (i32, i32, i32) {
    %c0_i32 = arith.constant 0 : i32
    %c0_i32_0 = arith.constant 0 : i32
    %c0_i32_1 = arith.constant 0 : i32
    return %arg0, %c0_i32, %c0_i32_0 : i32, i32, i32
  }
  func.func @transform_1(%arg0: i32) -> (i32, i32) {
    %c0_i32 = arith.constant 0 : i32
    %c0_i32_0 = arith.constant 0 : i32
    %c0_i32_1 = arith.constant 0 : i32
    return %c0_i32, %c0_i32_0 : i32, i32
  }
  func.func @transform_2(%arg0: i32) -> (i32, i32) {
    %c0_i32 = arith.constant 0 : i32
    %c0_i32_0 = arith.constant 0 : i32
    %c0_i32_1 = arith.constant 0 : i32
    return %c0_i32, %c0_i32_0 : i32, i32
  }
  func.func @transform_3(%arg0: i32) -> (i32, i32) {
    %c0_i32 = arith.constant 0 : i32
    %c0_i32_0 = arith.constant 0 : i32
    %c0_i32_1 = arith.constant 0 : i32
    return %c0_i32, %c0_i32_0 : i32, i32
  }
  func.func @transform_4(%arg0: i32) -> (i32, i32, i32) {
    %c0_i32 = arith.constant 0 : i32
    %c0_i32_0 = arith.constant 0 : i32
    %c0_i32_1 = arith.constant 0 : i32
    %c0_i32_2 = arith.constant 0 : i32
    return %c0_i32, %c0_i32_0, %c0_i32_1 : i32, i32, i32
  }
  func.func @transform_5(%arg0: i32) -> (i32, i32) {
    %c0_i32 = arith.constant 0 : i32
    %c0_i32_0 = arith.constant 0 : i32
    %c0_i32_1 = arith.constant 0 : i32
    return %c0_i32, %c0_i32_0 : i32, i32
  }
  func.func @transform_6(%arg0: i32) -> (i32, i32) {
    %c0_i32 = arith.constant 0 : i32
    %c0_i32_0 = arith.constant 0 : i32
    %c0_i32_1 = arith.constant 0 : i32
    return %c0_i32, %c0_i32_0 : i32, i32
  }
  func.func @transform_7(%arg0: i32) -> (i32, i32) {
    %c0_i32 = arith.constant 0 : i32
    %c0_i32_0 = arith.constant 0 : i32
    %c0_i32_1 = arith.constant 0 : i32
    return %c0_i32, %c0_i32_0 : i32, i32
  }
  func.func @transform_8(%arg0: i32) -> (i32, i32) {
    %c0_i32 = arith.constant 0 : i32
    %c0_i32_0 = arith.constant 0 : i32
    %c0_i32_1 = arith.constant 0 : i32
    return %c0_i32, %c0_i32_0 : i32, i32
  }
  func.func @transform_9(%arg0: i32) -> (i32, i32) {
    %c0_i32 = arith.constant 0 : i32
    %c0_i32_0 = arith.constant 0 : i32
    %c0_i32_1 = arith.constant 0 : i32
    return %c0_i32, %c0_i32_0 : i32, i32
  }
  func.func @transform_10(%arg0: i32) -> (i32, i32) {
    %c0_i32 = arith.constant 0 : i32
    %c0_i32_0 = arith.constant 0 : i32
    %c0_i32_1 = arith.constant 0 : i32
    return %c0_i32, %c0_i32_0 : i32, i32
  }
  func.func @transform_11(%arg0: i32) -> (i32, i32) {
    %c0_i32 = arith.constant 0 : i32
    %c0_i32_0 = arith.constant 0 : i32
    %c0_i32_1 = arith.constant 0 : i32
    return %c0_i32, %c0_i32_0 : i32, i32
  }
  func.func @transform_12(%arg0: i32) -> (i32, i32, i32) {
    %c0_i32 = arith.constant 0 : i32
    %c0_i32_0 = arith.constant 0 : i32
    %c0_i32_1 = arith.constant 0 : i32
    return %arg0, %c0_i32, %c0_i32_0 : i32, i32, i32
  }
}

</mosaic_0001>

<llo_original>
// kernel: tpu_custom_call.1
$region0: #{tpu_custom_call.1}
  #allocation0 [shape = 'u32[]', space=smem, size = 0x4, offset = 0x4, fixed_abs, tag = 'smem constant byte address 0x4 - core index']
  #allocation1 [shape = 'u32[144,128]{1,0:T(1,128)}', space=vmem, size = 0x12000, scoped, tag = 'internal scratch']
  #allocation2 [shape = 'f32[8,32]{1,0:T(8,128)}', space=vmem, size = 0x1000, scoped, tag = 'scratch operand']
  %s0 = inlined_call_operand.vmem [shape: f32[2,8,32], index: 0, kind: input, shape index: {}]
  %s1 = inlined_call_operand.vmem [shape: f32[1,32], index: 1, kind: input, shape index: {}]
  %s2 = inlined_call_operand.vmem [shape: f32[1,32], index: 2, kind: input, shape index: {}]
  %s3 = inlined_call_operand.vmem [shape: f32[96,32], index: 3, kind: input, shape index: {}]
  %s4 = inlined_call_operand.vmem [shape: f32[4,8,32], index: 4, kind: input, shape index: {}]
  %s5 = inlined_call_operand.vmem [shape: f32[1,32], index: 5, kind: input, shape index: {}]
  %s6 = inlined_call_operand.vmem [shape: f32[1,32], index: 6, kind: input, shape index: {}]
  %s7 = inlined_call_operand.vmem [shape: f32[1,32], index: 7, kind: input, shape index: {}]
  %s8 = inlined_call_operand.vmem [shape: f32[32,128], index: 8, kind: input, shape index: {}]
  %s9 = inlined_call_operand.vmem [shape: f32[1,128], index: 9, kind: input, shape index: {}]
  %s10 = inlined_call_operand.vmem [shape: f32[128,32], index: 10, kind: input, shape index: {}]
  %s11 = inlined_call_operand.vmem [shape: f32[1,32], index: 11, kind: input, shape index: {}]
  %s12 = inlined_call_operand.hbm [shape: f32[2,8,32], index: 12, kind: output, shape index: {}]
  %s13 = sld [smem:[#allocation0]]
  $region81: #{tpu_custom_call.1} parent=0
    _
  %s15 = ssub.s32 1, %s13
  %s16 = scalar_select 0, %s15, %s13
  $region1: #{tpu_custom_call.1} parent=0
    #allocation3 [shape = 'u8[8192]{0}', space=vmem, size = 0x2000, scoped, tag = 'output window, operand 0']
    #allocation4 [shape = 's32[2]{0}', space=sflag, size = 0x8, scoped, tag = 'scoped memory for tpu_custom_call.1']
    %17 = vsyncpa [#allocation4], 0
    %s18 = scalar_lea.sflag [#allocation4], 1
    %19 = vsyncpa %s18, 0
    loop: start=0, step=1, limit=4
    $region2: #{tpu_custom_call.1} parent=1 // loop_pre_header
      _
    $region3: #{tpu_custom_call.1} parent=1 // loop_header
      %s21 = sphi 0, %s25
      %p22 = scmp.ge.s32.totalorder %s21, 4
      %s31 = sphi 0, %s33
      %s34 = sphi 0, %s31
      %s35 = sphi 0, %s34
      %s51 = sphi 0, %s35
      %s55 = sphi 0, %s55
      %s57 = sphi 0, %s55
      %s58 = sphi 0, %s57
      %s72 = sphi 0, %s58
      %s76 = sphi 0, %s76
      %s78 = sphi 0, %s76
      %s79 = sphi 0, %s78
      %s93 = sphi 0, %s79
      %s97 = sphi 0, %s97
      %s99 = sphi 0, %s97
      %s100 = sphi 0, %s99
      %s114 = sphi 0, %s100
      %s118 = sphi 0, %s118
      %s120 = sphi 0, %s118
      %s121 = sphi 0, %s120
      %s135 = sphi 0, %s121
      %s139 = sphi 0, %s139
      %s141 = sphi 0, %s139
      %s142 = sphi 0, %s141
      %s156 = sphi 0, %s142
      %s160 = sphi 0, %s160
      %s162 = sphi 0, %s160
      %s163 = sphi 0, %s162
      %s177 = sphi 0, %s163
      %s181 = sphi 0, %s181
      %s183 = sphi 0, %s181
      %s184 = sphi 0, %s183
      %s198 = sphi 0, %s184
      %s202 = sphi 0, %s202
      %s204 = sphi 0, %s202
      %s205 = sphi 0, %s204
      %s219 = sphi 0, %s205
      %s223 = sphi 0, %s223
      %s225 = sphi 0, %s223
      %s226 = sphi 0, %s225
      %s240 = sphi 0, %s226
      %s244 = sphi 0, %s244
      %s246 = sphi 0, %s244
      %s247 = sphi 0, %s246
      %s261 = sphi 0, %s247
      %s265 = sphi 0, %s265
      %s267 = sphi 0, %s265
      %s268 = sphi 0, %s267
      %s282 = sphi 0, %s268
      %s288 = sphi 0, %s290
      %s291 = sphi 0, %s288
      %s292 = sphi 0, %s291
      %s308 = sphi 0, %s292
    $region4: #{tpu_custom_call.1} parent=1 // loop_header_branch
      %24 = sbr.rel (%p22) target = $region8
    $region5: #{tpu_custom_call.1} parent=1 // loop_body
      %s26 = ssub.s32 %s21, 1
      %s27 = ssub.s32 %s21, 2
      %s28 = sadd.s32 %s21, 1
      %s29 = ssub.s32 %s21, %s28
      %p30 = scmp.eq.s32.totalorder %s29, 0
      %s32 = sadd.s32 %s31, 1
      %s33 = scalar_select %p30, %s31, %s32
      %p36 = pneg %p30
      %p37 = scmp.eq.s32.totalorder %s21, 1
      %p38 = por %p36, %p37
      %p39 = scmp.ne.s32.totalorder %s31, %s34
      %p40 = scmp.eq.s32.totalorder %s21, 0
      %p41 = por %p39, %p40
      %p42 = scmp.ne.s32.totalorder %s31, %s34
      %p43 = scmp.eq.s32.totalorder %s26, 1
      %p44 = por %p42, %p43
      %p45 = scmp.ne.s32.totalorder %s34, %s35
      %p46 = scmp.eq.s32.totalorder %s26, 0
      %p47 = por %p45, %p46
      %p48 = scmp.ne.s32.totalorder %s34, %s35
      %p49 = scmp.eq.s32.totalorder %s27, 1
      %p50 = por %p48, %p49
      %p52 = scmp.ne.s32.totalorder %s35, %s51
      %p53 = scmp.eq.s32.totalorder %s27, 0
      %p54 = por %p52, %p53
      %s56 = sadd.s32 %s55, 1
      %p59 = scmp.eq.s32.totalorder %s21, 1
      %p60 = scmp.ne.s32.totalorder %s55, %s57
      %p61 = scmp.eq.s32.totalorder %s21, 0
      %p62 = por %p60, %p61
      %p63 = scmp.ne.s32.totalorder %s55, %s57
      %p64 = scmp.eq.s32.totalorder %s26, 1
      %p65 = por %p63, %p64
      %p66 = scmp.ne.s32.totalorder %s57, %s58
      %p67 = scmp.eq.s32.totalorder %s26, 0
      %p68 = por %p66, %p67
      %p69 = scmp.ne.s32.totalorder %s57, %s58
      %p70 = scmp.eq.s32.totalorder %s27, 1
      %p71 = por %p69, %p70
      %p73 = scmp.ne.s32.totalorder %s58, %s72
      %p74 = scmp.eq.s32.totalorder %s27, 0
      %p75 = por %p73, %p74
      %s77 = sadd.s32 %s76, 1
      %p80 = scmp.eq.s32.totalorder %s21, 1
      %p81 = scmp.ne.s32.totalorder %s76, %s78
      %p82 = scmp.eq.s32.totalorder %s21, 0
      %p83 = por %p81, %p82
      %p84 = scmp.ne.s32.totalorder %s76, %s78
      %p85 = scmp.eq.s32.totalorder %s26, 1
      %p86 = por %p84, %p85
      %p87 = scmp.ne.s32.totalorder %s78, %s79
      %p88 = scmp.eq.s32.totalorder %s26, 0
      %p89 = por %p87, %p88
      %p90 = scmp.ne.s32.totalorder %s78, %s79
      %p91 = scmp.eq.s32.totalorder %s27, 1
      %p92 = por %p90, %p91
      %p94 = scmp.ne.s32.totalorder %s79, %s93
      %p95 = scmp.eq.s32.totalorder %s27, 0
      %p96 = por %p94, %p95
      %s98 = sadd.s32 %s97, 1
      %p101 = scmp.eq.s32.totalorder %s21, 1
      %p102 = scmp.ne.s32.totalorder %s97, %s99
      %p103 = scmp.eq.s32.totalorder %s21, 0
      %p104 = por %p102, %p103
      %p105 = scmp.ne.s32.totalorder %s97, %s99
      %p106 = scmp.eq.s32.totalorder %s26, 1
      %p107 = por %p105, %p106
      %p108 = scmp.ne.s32.totalorder %s99, %s100
      %p109 = scmp.eq.s32.totalorder %s26, 0
      %p110 = por %p108, %p109
      %p111 = scmp.ne.s32.totalorder %s99, %s100
      %p112 = scmp.eq.s32.totalorder %s27, 1
      %p113 = por %p111, %p112
      %p115 = scmp.ne.s32.totalorder %s100, %s114
      %p116 = scmp.eq.s32.totalorder %s27, 0
      %p117 = por %p115, %p116
      %s119 = sadd.s32 %s118, 1
      %p122 = scmp.eq.s32.totalorder %s21, 1
      %p123 = scmp.ne.s32.totalorder %s118, %s120
      %p124 = scmp.eq.s32.totalorder %s21, 0
      %p125 = por %p123, %p124
      %p126 = scmp.ne.s32.totalorder %s118, %s120
      %p127 = scmp.eq.s32.totalorder %s26, 1
      %p128 = por %p126, %p127
      %p129 = scmp.ne.s32.totalorder %s120, %s121
      %p130 = scmp.eq.s32.totalorder %s26, 0
      %p131 = por %p129, %p130
      %p132 = scmp.ne.s32.totalorder %s120, %s121
      %p133 = scmp.eq.s32.totalorder %s27, 1
      %p134 = por %p132, %p133
      %p136 = scmp.ne.s32.totalorder %s121, %s135
      %p137 = scmp.eq.s32.totalorder %s27, 0
      %p138 = por %p136, %p137
      %s140 = sadd.s32 %s139, 1
      %p143 = scmp.eq.s32.totalorder %s21, 1
      %p144 = scmp.ne.s32.totalorder %s139, %s141
      %p145 = scmp.eq.s32.totalorder %s21, 0
      %p146 = por %p144, %p145
      %p147 = scmp.ne.s32.totalorder %s139, %s141
      %p148 = scmp.eq.s32.totalorder %s26, 1
      %p149 = por %p147, %p148
      %p150 = scmp.ne.s32.totalorder %s141, %s142
      %p151 = scmp.eq.s32.totalorder %s26, 0
      %p152 = por %p150, %p151
      %p153 = scmp.ne.s32.totalorder %s141, %s142
      %p154 = scmp.eq.s32.totalorder %s27, 1
      %p155 = por %p153, %p154
      %p157 = scmp.ne.s32.totalorder %s142, %s156
      %p158 = scmp.eq.s32.totalorder %s27, 0
      %p159 = por %p157, %p158
      %s161 = sadd.s32 %s160, 1
      %p164 = scmp.eq.s32.totalorder %s21, 1
      %p165 = scmp.ne.s32.totalorder %s160, %s162
      %p166 = scmp.eq.s32.totalorder %s21, 0
      %p167 = por %p165, %p166
      %p168 = scmp.ne.s32.totalorder %s160, %s162
      %p169 = scmp.eq.s32.totalorder %s26, 1
      %p170 = por %p168, %p169
      %p171 = scmp.ne.s32.totalorder %s162, %s163
      %p172 = scmp.eq.s32.totalorder %s26, 0
      %p173 = por %p171, %p172
      %p174 = scmp.ne.s32.totalorder %s162, %s163
      %p175 = scmp.eq.s32.totalorder %s27, 1
      %p176 = por %p174, %p175
      %p178 = scmp.ne.s32.totalorder %s163, %s177
      %p179 = scmp.eq.s32.totalorder %s27, 0
      %p180 = por %p178, %p179
      %s182 = sadd.s32 %s181, 1
      %p185 = scmp.eq.s32.totalorder %s21, 1
      %p186 = scmp.ne.s32.totalorder %s181, %s183
      %p187 = scmp.eq.s32.totalorder %s21, 0
      %p188 = por %p186, %p187
      %p189 = scmp.ne.s32.totalorder %s181, %s183
      %p190 = scmp.eq.s32.totalorder %s26, 1
      %p191 = por %p189, %p190
      %p192 = scmp.ne.s32.totalorder %s183, %s184
      %p193 = scmp.eq.s32.totalorder %s26, 0
      %p194 = por %p192, %p193
      %p195 = scmp.ne.s32.totalorder %s183, %s184
      %p196 = scmp.eq.s32.totalorder %s27, 1
      %p197 = por %p195, %p196
      %p199 = scmp.ne.s32.totalorder %s184, %s198
      %p200 = scmp.eq.s32.totalorder %s27, 0
      %p201 = por %p199, %p200
      %s203 = sadd.s32 %s202, 1
      %p206 = scmp.eq.s32.totalorder %s21, 1
      %p207 = scmp.ne.s32.totalorder %s202, %s204
      %p208 = scmp.eq.s32.totalorder %s21, 0
      %p209 = por %p207, %p208
      %p210 = scmp.ne.s32.totalorder %s202, %s204
      %p211 = scmp.eq.s32.totalorder %s26, 1
      %p212 = por %p210, %p211
      %p213 = scmp.ne.s32.totalorder %s204, %s205
      %p214 = scmp.eq.s32.totalorder %s26, 0
      %p215 = por %p213, %p214
      %p216 = scmp.ne.s32.totalorder %s204, %s205
      %p217 = scmp.eq.s32.totalorder %s27, 1
      %p218 = por %p216, %p217
      %p220 = scmp.ne.s32.totalorder %s205, %s219
      %p221 = scmp.eq.s32.totalorder %s27, 0
      %p222 = por %p220, %p221
      %s224 = sadd.s32 %s223, 1
      %p227 = scmp.eq.s32.totalorder %s21, 1
      %p228 = scmp.ne.s32.totalorder %s223, %s225
      %p229 = scmp.eq.s32.totalorder %s21, 0
      %p230 = por %p228, %p229
      %p231 = scmp.ne.s32.totalorder %s223, %s225
      %p232 = scmp.eq.s32.totalorder %s26, 1
      %p233 = por %p231, %p232
      %p234 = scmp.ne.s32.totalorder %s225, %s226
      %p235 = scmp.eq.s32.totalorder %s26, 0
      %p236 = por %p234, %p235
      %p237 = scmp.ne.s32.totalorder %s225, %s226
      %p238 = scmp.eq.s32.totalorder %s27, 1
      %p239 = por %p237, %p238
      %p241 = scmp.ne.s32.totalorder %s226, %s240
      %p242 = scmp.eq.s32.totalorder %s27, 0
      %p243 = por %p241, %p242
      %s245 = sadd.s32 %s244, 1
      %p248 = scmp.eq.s32.totalorder %s21, 1
      %p249 = scmp.ne.s32.totalorder %s244, %s246
      %p250 = scmp.eq.s32.totalorder %s21, 0
      %p251 = por %p249, %p250
      %p252 = scmp.ne.s32.totalorder %s244, %s246
      %p253 = scmp.eq.s32.totalorder %s26, 1
      %p254 = por %p252, %p253
      %p255 = scmp.ne.s32.totalorder %s246, %s247
      %p256 = scmp.eq.s32.totalorder %s26, 0
      %p257 = por %p255, %p256
      %p258 = scmp.ne.s32.totalorder %s246, %s247
      %p259 = scmp.eq.s32.totalorder %s27, 1
      %p260 = por %p258, %p259
      %p262 = scmp.ne.s32.totalorder %s247, %s261
      %p263 = scmp.eq.s32.totalorder %s27, 0
      %p264 = por %p262, %p263
      %s266 = sadd.s32 %s265, 1
      %p269 = scmp.eq.s32.totalorder %s21, 1
      %p270 = scmp.ne.s32.totalorder %s265, %s267
      %p271 = scmp.eq.s32.totalorder %s21, 0
      %p272 = por %p270, %p271
      %p273 = scmp.ne.s32.totalorder %s265, %s267
      %p274 = scmp.eq.s32.totalorder %s26, 1
      %p275 = por %p273, %p274
      %p276 = scmp.ne.s32.totalorder %s267, %s268
      %p277 = scmp.eq.s32.totalorder %s26, 0
      %p278 = por %p276, %p277
      %p279 = scmp.ne.s32.totalorder %s267, %s268
      %p280 = scmp.eq.s32.totalorder %s27, 1
      %p281 = por %p279, %p280
      %p283 = scmp.ne.s32.totalorder %s268, %s282
      %p284 = scmp.eq.s32.totalorder %s27, 0
      %p285 = por %p283, %p284
      %s286 = ssub.s32 %s21, %s28
      %p287 = scmp.eq.s32.totalorder %s286, 0
      %s289 = sadd.s32 %s288, 1
      %s290 = scalar_select %p287, %s288, %s289
      %p293 = pneg %p287
      %p294 = scmp.eq.s32.totalorder %s21, 1
      %p295 = por %p293, %p294
      %p296 = scmp.ne.s32.totalorder %s288, %s291
      %p297 = scmp.eq.s32.totalorder %s21, 0
      %p298 = por %p296, %p297
      %p299 = scmp.ne.s32.totalorder %s288, %s291
      %p300 = scmp.eq.s32.totalorder %s26, 1
      %p301 = por %p299, %p300
      %p302 = scmp.ne.s32.totalorder %s291, %s292
      %p303 = scmp.eq.s32.totalorder %s26, 0
      %p304 = por %p302, %p303
      %p305 = scmp.ne.s32.totalorder %s291, %s292
      %p306 = scmp.eq.s32.totalorder %s27, 1
      %p307 = por %p305, %p306
      %p309 = scmp.ne.s32.totalorder %s292, %s308
      %p310 = scmp.eq.s32.totalorder %s27, 0
      %p311 = por %p309, %p310
      %p312 = scmp.le.s32.totalorder 1, %s21
      %p313 = scmp.lt.s32.totalorder %s21, 3
      %p314 = pnand %p312, %p313
      %p315 = pneg %p314
      // Predicated region
      $region9: #{tpu_custom_call.1} parent=5 // pred_check
        _
      $region10: #{tpu_custom_call.1} parent=5 // pred_check_branch
        %317 = sbr.rel (%p314) target = $region12
      $region11: #{tpu_custom_call.1} parent=5 // pred_region
        %s318 = ssub.s32 %s21, 1
        // Predicated region
        $region13: #{tpu_custom_call.1} parent=11 // pred_check
          %p319 = pneg %p68
        $region14: #{tpu_custom_call.1} parent=11 // pred_check_branch
          %321 = sbr.rel (%p319) target = $region16
        $region15: #{tpu_custom_call.1} parent=11 // pred_region
          _
        $region16: #{tpu_custom_call.1} parent=11 // pred_fallthru
          _
        // Predicated region
        $region17: #{tpu_custom_call.1} parent=11 // pred_check
          %p322 = pneg %p89
        $region18: #{tpu_custom_call.1} parent=11 // pred_check_branch
          %324 = sbr.rel (%p322) target = $region20
        $region19: #{tpu_custom_call.1} parent=11 // pred_region
          _
        $region20: #{tpu_custom_call.1} parent=11 // pred_fallthru
          _
        // Predicated region
        $region21: #{tpu_custom_call.1} parent=11 // pred_check
          %p325 = pneg %p110
        $region22: #{tpu_custom_call.1} parent=11 // pred_check_branch
          %327 = sbr.rel (%p325) target = $region24
        $region23: #{tpu_custom_call.1} parent=11 // pred_region
          _
        $region24: #{tpu_custom_call.1} parent=11 // pred_fallthru
          _
        // Predicated region
        $region25: #{tpu_custom_call.1} parent=11 // pred_check
          %p328 = pneg %p131
        $region26: #{tpu_custom_call.1} parent=11 // pred_check_branch
          %330 = sbr.rel (%p328) target = $region28
        $region27: #{tpu_custom_call.1} parent=11 // pred_region
          _
        $region28: #{tpu_custom_call.1} parent=11 // pred_fallthru
          _
        // Predicated region
        $region29: #{tpu_custom_call.1} parent=11 // pred_check
          %p331 = pneg %p152
        $region30: #{tpu_custom_call.1} parent=11 // pred_check_branch
          %333 = sbr.rel (%p331) target = $region32
        $region31: #{tpu_custom_call.1} parent=11 // pred_region
          _
        $region32: #{tpu_custom_call.1} parent=11 // pred_fallthru
          _
        // Predicated region
        $region33: #{tpu_custom_call.1} parent=11 // pred_check
          %p334 = pneg %p173
        $region34: #{tpu_custom_call.1} parent=11 // pred_check_branch
          %336 = sbr.rel (%p334) target = $region36
        $region35: #{tpu_custom_call.1} parent=11 // pred_region
          _
        $region36: #{tpu_custom_call.1} parent=11 // pred_fallthru
          _
        // Predicated region
        $region37: #{tpu_custom_call.1} parent=11 // pred_check
          %p337 = pneg %p194
        $region38: #{tpu_custom_call.1} parent=11 // pred_check_branch
          %339 = sbr.rel (%p337) target = $region40
        $region39: #{tpu_custom_call.1} parent=11 // pred_region
          _
        $region40: #{tpu_custom_call.1} parent=11 // pred_fallthru
          _
        // Predicated region
        $region41: #{tpu_custom_call.1} parent=11 // pred_check
          %p340 = pneg %p215
        $region42: #{tpu_custom_call.1} parent=11 // pred_check_branch
          %342 = sbr.rel (%p340) target = $region44
        $region43: #{tpu_custom_call.1} parent=11 // pred_region
          _
        $region44: #{tpu_custom_call.1} parent=11 // pred_fallthru
          _
        // Predicated region
        $region45: #{tpu_custom_call.1} parent=11 // pred_check
          %p343 = pneg %p236
        $region46: #{tpu_custom_call.1} parent=11 // pred_check_branch
          %345 = sbr.rel (%p343) target = $region48
        $region47: #{tpu_custom_call.1} parent=11 // pred_region
          _
        $region48: #{tpu_custom_call.1} parent=11 // pred_fallthru
          _
        // Predicated region
        $region49: #{tpu_custom_call.1} parent=11 // pred_check
          %p346 = pneg %p257
        $region50: #{tpu_custom_call.1} parent=11 // pred_check_branch
          %348 = sbr.rel (%p346) target = $region52
        $region51: #{tpu_custom_call.1} parent=11 // pred_region
          _
        $region52: #{tpu_custom_call.1} parent=11 // pred_fallthru
          _
        // Predicated region
        $region53: #{tpu_custom_call.1} parent=11 // pred_check
          %p349 = pneg %p278
        $region54: #{tpu_custom_call.1} parent=11 // pred_check_branch
          %351 = sbr.rel (%p349) target = $region56
        $region55: #{tpu_custom_call.1} parent=11 // pred_region
          _
        $region56: #{tpu_custom_call.1} parent=11 // pred_fallthru
          _
      $region12: #{tpu_custom_call.1} parent=5 // pred_fallthru
        _
      %p352 = scmp.lt.s32.totalorder %s21, 2
      // Predicated region
      $region57: #{tpu_custom_call.1} parent=5 // pred_check
        %p353 = pneg %p352
      $region58: #{tpu_custom_call.1} parent=5 // pred_check_branch
        %355 = sbr.rel (%p353) target = $region60
      $region59: #{tpu_custom_call.1} parent=5 // pred_region
        // Predicated region
        $region61: #{tpu_custom_call.1} parent=59 // pred_check
          %p356 = pneg %p41
        $region62: #{tpu_custom_call.1} parent=59 // pred_check_branch
          %358 = sbr.rel (%p356) target = $region64
        $region63: #{tpu_custom_call.1} parent=59 // pred_region
          %p359 = scmp.lt.s32.totalorder %s21, 1
          %s360 = scalar_select %p359, %s21, 1
          %s361 = smul.addr %s360, 8
          %s362 = scalar_lea.vmem %s0, %s361
        $region64: #{tpu_custom_call.1} parent=59 // pred_fallthru
          _
      $region60: #{tpu_custom_call.1} parent=5 // pred_fallthru
        _
      %p363 = scmp.le.s32.totalorder 1, %s21
      %p364 = scmp.lt.s32.totalorder %s21, 3
      %p365 = pnand %p363, %p364
      %p366 = pneg %p365
      // Predicated region
      $region65: #{tpu_custom_call.1} parent=5 // pred_check
        _
      $region66: #{tpu_custom_call.1} parent=5 // pred_check_branch
        %368 = sbr.rel (%p365) target = $region68
      $region67: #{tpu_custom_call.1} parent=5 // pred_region
        %s369 = ssub.s32 %s21, 1
        %p370 = scmp.lt.s32.totalorder %s26, 1
        %s371 = scalar_select %p370, %s26, 1
        %s372 = smul.addr %s371, 8
        %s373 = scalar_lea.vmem %s0, %s372
        %p374 = pneg %p47
        %p375 = pneg %p44
        %p376 = pneg %p68
        %p377 = pneg %p65
        %p378 = pneg %p89
        %p379 = pneg %p86
        %p380 = pneg %p110
        %p381 = pneg %p107
        %p382 = pneg %p131
        %p383 = pneg %p128
        %p384 = pneg %p152
        %p385 = pneg %p149
        %p386 = pneg %p173
        %p387 = pneg %p170
        %p388 = pneg %p194
        %p389 = pneg %p191
        %p390 = pneg %p215
        %p391 = pneg %p212
        %p392 = pneg %p236
        %p393 = pneg %p233
        %p394 = pneg %p257
        %p395 = pneg %p254
        %p396 = pneg %p278
        %p397 = pneg %p275
        %p398 = pneg %p304
        %p399 = pneg %p301
        %s400 = sand.u32 %s291, 1
        %s401 = scalar_lea.sflag [#allocation4], %s400
        %s402 = sand.u32 %s291, 1
        %s403 = smul.addr %s402, 8
        %s404 = scalar_lea.vmem [#allocation3], %s403
        %p405 = scmp.lt.s32.totalorder %s26, 1
        %s406 = scalar_select %p405, %s26, 1
        %s407 = smul.addr %s406, 8
        %s408 = scalar_lea.vmem %s0, %s407
        %v409 = vld [vmem:[%s408] sm:$0xff]
        %vm410 = vcmask 261120
        %v411 = vsel %vm410, %v409, 0.0
        %412 = vadd.xlane.f32.xlu0 %v411
        %v413 = vpop.xlane.xlu0 %412
        %v414 = vrcp.pop 32.0
        %v415 = vmul.f32 %v413, %v414
        %v416 = vmul.f32 %v409, %v409
        %v417 = vsel %vm410, %v416, 0.0
        %418 = vadd.xlane.f32.xlu0 %v417
        %v419 = vpop.xlane.xlu0 %418
        %v420 = vmul.f32 %v419, %v414
        %v421 = vmul.f32 %v415, %v415
        %v422 = vsub.f32 %v420, %v421
        %v423 = vsub.f32 %v409, %v415
        %v424 = vadd.f32 %v422, 1e-05
        %v425 = vrsqrt.pop %v424
        %v426 = vmul.f32 %v423, %v425
        %v427 = vld [vmem:[%s1] sm:$0x1]
        %v429 = vlaneseq
        %v430 = vshrl.u32 %v429, 7
        %v431 = vsub.s32 0, %v430
        %v432 = vrot.slane %v427, %v431
        %v434 = vmul.f32 %v426, %v432
        %v435 = vld [vmem:[%s2] sm:$0x1]
        %v437 = vlaneseq
        %v438 = vshrl.u32 %v437, 7
        %v439 = vsub.s32 0, %v438
        %v440 = vrot.slane %v435, %v439
        %v442 = vadd.f32 %v434, %v440
        %v443 = vld [vmem:[%s3] sm:$0xff]
        %v444 = vld [vmem:[%s3 + $0x8] sm:$0xff]
        %v445 = vld [vmem:[%s3 + $0x10] sm:$0xff]
        %v446 = vld [vmem:[%s3 + $0x18] sm:$0xff]
        %v447 = vld [vmem:[%s3 + $0x20] sm:$0xff]
        %v448 = vld [vmem:[%s3 + $0x28] sm:$0xff]
        %v449 = vld [vmem:[%s3 + $0x30] sm:$0xff]
        %v450 = vld [vmem:[%s3 + $0x38] sm:$0xff]
        %v451 = vld [vmem:[%s3 + $0x40] sm:$0xff]
        %v452 = vld [vmem:[%s3 + $0x48] sm:$0xff]
        %v453 = vld [vmem:[%s3 + $0x50] sm:$0xff]
        %v454 = vld [vmem:[%s3 + $0x58] sm:$0xff]
        %v456 = vsel %vm410, %v443, 0
        %v459 = vsel %vm410, %v444, 0
        %v462 = vsel %vm410, %v445, 0
        %v465 = vsel %vm410, %v446, 0
        %v468 = vsel %vm410, %v447, 0
        %v471 = vsel %vm410, %v448, 0
        %v474 = vsel %vm410, %v449, 0
        %v477 = vsel %vm410, %v450, 0
        %v480 = vsel %vm410, %v451, 0
        %v483 = vsel %vm410, %v452, 0
        %v486 = vsel %vm410, %v453, 0
        %v489 = vsel %vm410, %v454, 0
        %v492 = vsel %vm410, %v442, 0
        %494 = vmatprep.subr.mxu0 0.0
        %495 = vmatpush1.xpose.msra.mxu0 %v492
        %496 = vmatprep.subr.mxu0 0.0
        %497 = vmatpush1.xpose.msra.mxu0 0.0
        %498 = vmatprep.subr.mxu0 0.0
        %499 = vmatpush1.xpose.msra.mxu0 0.0
        %500 = vmatprep.subr.mxu0 0.0
        %501 = vmatpush1.xpose.msra.mxu0 0.0
        %502 = vmatprep.subr.mxu0 0.0
        %503 = vmatpush1.xpose.msra.mxu0 0.0
        %504 = vmatprep.subr.mxu0 0.0
        %505 = vmatpush1.xpose.msra.mxu0 0.0
        %506 = vmatprep.subr.mxu0 0.0
        %507 = vmatpush1.xpose.msra.mxu0 0.0
        %508 = vmatprep.subr.mxu0 0.0
        %509 = vmatpush1.xpose.msra.mxu0 0.0
        %510 = vmatprep.subr.mxu0 0.0
        %511 = vmatpush1.xpose.msra.mxu0 0.0
        %512 = vmatprep.subr.mxu0 0.0
        %513 = vmatpush1.xpose.msra.mxu0 0.0
        %514 = vmatprep.subr.mxu0 0.0
        %515 = vmatpush1.xpose.msra.mxu0 0.0
        %516 = vmatprep.subr.mxu0 0.0
        %517 = vmatpush1.xpose.msra.mxu0 0.0
        %518 = vmatprep.subr.mxu0 0.0
        %519 = vmatpush1.xpose.msra.mxu0 0.0
        %520 = vmatprep.subr.mxu0 0.0
        %521 = vmatpush1.xpose.msra.mxu0 0.0
        %522 = vmatprep.subr.mxu0 0.0
        %523 = vmatpush1.xpose.msra.mxu0 0.0
        %524 = vmatprep.subr.mxu0 0.0
        %525 = vmatpush1.xpose.msra.mxu0 0.0
        %526 = vmatprep.subr.mxu0 0.0
        %527 = vmatpush1.xpose.msra.mxu0 0.0
        %528 = vmatprep.subr.mxu0 0.0
        %529 = vmatpush1.xpose.msra.mxu0 0.0
        %530 = vmatprep.subr.mxu0 0.0
        %531 = vmatpush1.xpose.msra.mxu0 0.0
        %532 = vmatprep.subr.mxu0 0.0
        %533 = vmatpush1.xpose.msra.mxu0 0.0
        %534 = vmatprep.subr.mxu0 0.0
        %535 = vmatpush1.xpose.msra.mxu0 0.0
        %536 = vmatprep.subr.mxu0 0.0
        %537 = vmatpush1.xpose.msra.mxu0 0.0
        %538 = vmatprep.subr.mxu0 0.0
        %539 = vmatpush1.xpose.msra.mxu0 0.0
        %540 = vmatprep.subr.mxu0 0.0
        %541 = vmatpush1.xpose.msra.mxu0 0.0
        %542 = vmatprep.subr.mxu0 0.0
        %543 = vmatpush1.xpose.msra.mxu0 0.0
        %544 = vmatprep.subr.mxu0 0.0
        %545 = vmatpush1.xpose.msra.mxu0 0.0
        %546 = vmatprep.subr.mxu0 0.0
        %547 = vmatpush1.xpose.msra.mxu0 0.0
        %548 = vmatprep.subr.mxu0 0.0
        %549 = vmatpush1.xpose.msra.mxu0 0.0
        %550 = vmatprep.subr.mxu0 0.0
        %551 = vmatpush1.xpose.msra.mxu0 0.0
        %552 = vmatprep.subr.mxu0 0.0
        %553 = vmatpush1.xpose.msra.mxu0 0.0
        %554 = vmatprep.subr.mxu0 0.0
        %555 = vmatpush1.xpose.msra.mxu0 0.0
        %556 = vmatprep.subr.mxu0 0.0
        %557 = vmatpush1.xpose.msra.mxu0 0.0
        %558 = vmatprep.mubr.f32.mxu0 0.0
        %559 = vmatmul.mubr.f32.gmra.mrb[0].mxu0 %v456
        %v560 = vpop.f32.mrb[0].mxu0
        %v561 = vadd.f32 0.0, %v560
        %v562 = vpop.f32.mrb[0].mxu0
        %563 = vmatprep.mubr.f32.mxu0 0.0
        %564 = vmatmul.mubr.f32.gmra.mrb[0].mxu0 %v459
        %v565 = vpop.f32.mrb[0].mxu0
        %v566 = vadd.f32 0.0, %v565
        %v567 = vpop.f32.mrb[0].mxu0
        %568 = vmatprep.mubr.f32.mxu0 0.0
        %569 = vmatmul.mubr.f32.gmra.mrb[0].mxu0 %v462
        %v570 = vpop.f32.mrb[0].mxu0
        %v571 = vadd.f32 0.0, %v570
        %v572 = vpop.f32.mrb[0].mxu0
        %573 = vmatprep.mubr.f32.mxu0 0.0
        %574 = vmatmul.mubr.f32.gmra.mrb[0].mxu0 %v465
        %v575 = vpop.f32.mrb[0].mxu0
        %v576 = vadd.f32 0.0, %v575
        %v577 = vpop.f32.mrb[0].mxu0
        %578 = vmatprep.mubr.f32.mxu0 0.0
        %579 = vmatmul.mubr.f32.gmra.mrb[0].mxu0 %v468
        %v580 = vpop.f32.mrb[0].mxu0
        %v581 = vadd.f32 0.0, %v580
        %v582 = vpop.f32.mrb[0].mxu0
        %583 = vmatprep.mubr.f32.mxu0 0.0
        %584 = vmatmul.mubr.f32.gmra.mrb[0].mxu0 %v471
        %v585 = vpop.f32.mrb[0].mxu0
        %v586 = vadd.f32 0.0, %v585
        %v587 = vpop.f32.mrb[0].mxu0
        %588 = vmatprep.mubr.f32.mxu0 0.0
        %589 = vmatmul.mubr.f32.gmra.mrb[0].mxu0 %v474
        %v590 = vpop.f32.mrb[0].mxu0
        %v591 = vadd.f32 0.0, %v590
        %v592 = vpop.f32.mrb[0].mxu0
        %593 = vmatprep.mubr.f32.mxu0 0.0
        %594 = vmatmul.mubr.f32.gmra.mrb[0].mxu0 %v477
        %v595 = vpop.f32.mrb[0].mxu0
        %v596 = vadd.f32 0.0, %v595
        %v597 = vpop.f32.mrb[0].mxu0
        %598 = vmatprep.mubr.f32.mxu0 0.0
        %599 = vmatmul.mubr.f32.gmra.mrb[0].mxu0 %v480
        %v600 = vpop.f32.mrb[0].mxu0
        %v601 = vadd.f32 0.0, %v600
        %v602 = vpop.f32.mrb[0].mxu0
        %603 = vmatprep.mubr.f32.mxu0 0.0
        %604 = vmatmul.mubr.f32.gmra.mrb[0].mxu0 %v483
        %v605 = vpop.f32.mrb[0].mxu0
        %v606 = vadd.f32 0.0, %v605
        %v607 = vpop.f32.mrb[0].mxu0
        %608 = vmatprep.mubr.f32.mxu0 0.0
        %609 = vmatmul.mubr.f32.gmra.mrb[0].mxu0 %v486
        %v610 = vpop.f32.mrb[0].mxu0
        %v611 = vadd.f32 0.0, %v610
        %v612 = vpop.f32.mrb[0].mxu0
        %613 = vmatprep.mubr.f32.mxu0 0.0
        %614 = vmatmul.mubr.f32.gmra.mrb[0].mxu0 %v489
        %v615 = vpop.f32.mrb[0].mxu0
        %v616 = vadd.f32 0.0, %v615
        %v617 = vpop.f32.mrb[0].mxu0
        %618 = vdwg.mxu0
        %619 = vst.msk [vmem:[#allocation2] sm:$0xff] %vm410, 0.0
        %620 = vxpose.xlu0.b32.start [1/16] %v561, 128
        %621 = vxpose.xlu0.b32.cont [2/16] 0.0, 128
        %622 = vxpose.xlu0.b32.cont [3/16] 0.0, 128
        %623 = vxpose.xlu0.b32.cont [4/16] 0.0, 128
        %624 = vxpose.xlu0.b32.cont [5/16] 0.0, 128
        %625 = vxpose.xlu0.b32.cont [6/16] 0.0, 128
        %626 = vxpose.xlu0.b32.cont [7/16] 0.0, 128
        %627 = vxpose.xlu0.b32.cont [8/16] 0.0, 128
        %628 = vxpose.xlu0.b32.cont [9/16] 0.0, 128
        %629 = vxpose.xlu0.b32.cont [10/16] 0.0, 128
        %630 = vxpose.xlu0.b32.cont [11/16] 0.0, 128
        %631 = vxpose.xlu0.b32.cont [12/16] 0.0, 128
        %632 = vxpose.xlu0.b32.cont [13/16] 0.0, 128
        %633 = vxpose.xlu0.b32.cont [14/16] 0.0, 128
        %634 = vxpose.xlu0.b32.cont [15/16] 0.0, 128
        %635 = vxpose.xlu0.b32.end [16/16] 0.0, 128
        %v636 = vpop.trf.xlu0
        %v637 = vpop.trf.xlu0
        %v638 = vpop.trf.xlu0
        %v639 = vpop.trf.xlu0
        %v640 = vpop.trf.xlu0
        %v641 = vpop.trf.xlu0
        %v642 = vpop.trf.xlu0
        %v643 = vpop.trf.xlu0
        %v644 = vpop.trf.xlu0
        %v645 = vpop.trf.xlu0
        %v646 = vpop.trf.xlu0
        %v647 = vpop.trf.xlu0
        %v648 = vpop.trf.xlu0
        %v649 = vpop.trf.xlu0
        %v650 = vpop.trf.xlu0
        %v651 = vpop.trf.xlu0
        %vm652 = vcmask 64512
        %v654 = vsel %vm652, %v636, 0
        %656 = vmatprep.subr.mxu0 0.0
        %657 = vmatpush1.msra.mxu0 %v581
        %658 = vmatprep.subr.mxu0 0.0
        %659 = vmatpush1.msra.mxu0 0.0
        %660 = vmatprep.subr.mxu0 0.0
        %661 = vmatpush1.msra.mxu0 0.0
        %662 = vmatprep.subr.mxu0 0.0
        %663 = vmatpush1.msra.mxu0 0.0
        %664 = vmatprep.subr.mxu0 0.0
        %665 = vmatpush1.msra.mxu0 0.0
        %666 = vmatprep.subr.mxu0 0.0
        %667 = vmatpush1.msra.mxu0 0.0
        %668 = vmatprep.subr.mxu0 0.0
        %669 = vmatpush1.msra.mxu0 0.0
        %670 = vmatprep.subr.mxu0 0.0
        %671 = vmatpush1.msra.mxu0 0.0
        %672 = vmatprep.subr.mxu0 0.0
        %673 = vmatpush1.msra.mxu0 0.0
        %674 = vmatprep.subr.mxu0 0.0
        %675 = vmatpush1.msra.mxu0 0.0
        %676 = vmatprep.subr.mxu0 0.0
        %677 = vmatpush1.msra.mxu0 0.0
        %678 = vmatprep.subr.mxu0 0.0
        %679 = vmatpush1.msra.mxu0 0.0
        %680 = vmatprep.subr.mxu0 0.0
        %681 = vmatpush1.msra.mxu0 0.0
        %682 = vmatprep.subr.mxu0 0.0
        %683 = vmatpush1.msra.mxu0 0.0
        %684 = vmatprep.subr.mxu0 0.0
        %685 = vmatpush1.msra.mxu0 0.0
        %686 = vmatprep.subr.mxu0 0.0
        %687 = vmatpush1.msra.mxu0 0.0
        %688 = vmatprep.subr.mxu0 0.0
        %689 = vmatpush1.msra.mxu0 0.0
        %690 = vmatprep.subr.mxu0 0.0
        %691 = vmatpush1.msra.mxu0 0.0
        %692 = vmatprep.subr.mxu0 0.0
        %693 = vmatpush1.msra.mxu0 0.0
        %694 = vmatprep.subr.mxu0 0.0
        %695 = vmatpush1.msra.mxu0 0.0
        %696 = vmatprep.subr.mxu0 0.0
        %697 = vmatpush1.msra.mxu0 0.0
        %698 = vmatprep.subr.mxu0 0.0
        %699 = vmatpush1.msra.mxu0 0.0
        %700 = vmatprep.subr.mxu0 0.0
        %701 = vmatpush1.msra.mxu0 0.0
        %702 = vmatprep.subr.mxu0 0.0
        %703 = vmatpush1.msra.mxu0 0.0
        %704 = vmatprep.subr.mxu0 0.0
        %705 = vmatpush1.msra.mxu0 0.0
        %706 = vmatprep.subr.mxu0 0.0
        %707 = vmatpush1.msra.mxu0 0.0
        %708 = vmatprep.subr.mxu0 0.0
        %709 = vmatpush1.msra.mxu0 0.0
        %710 = vmatprep.subr.mxu0 0.0
        %711 = vmatpush1.msra.mxu0 0.0
        %712 = vmatprep.subr.mxu0 0.0
        %713 = vmatpush1.msra.mxu0 0.0
        %714 = vmatprep.subr.mxu0 0.0
        %715 = vmatpush1.msra.mxu0 0.0
        %716 = vmatprep.subr.mxu0 0.0
        %717 = vmatpush1.msra.mxu0 0.0
        %718 = vmatprep.subr.mxu0 0.0
        %719 = vmatpush1.msra.mxu0 0.0
        %720 = vmatprep.mubr.f32.mxu0 0.0
        %721 = vmatmul.mubr.f32.gmra.mrb[0].mxu0 %v654
        %v722 = vpop.f32.mrb[0].mxu0
        %v723 = vadd.f32 0.0, %v722
        %v724 = vpop.f32.mrb[0].mxu0
        %725 = vdwg.mxu0
        %v726 = vsel %vm652, %v723, -inf
        %727 = vmax.xlane.f32.xlu0 %v726
        %v728 = vpop.xlane.xlu0 %727
        %v729 = vsub.f32 %v723, %v728
        %v730 = vmul.f32 %v729, 1.442695
        %v731 = vpow.pop %v730
        %v732 = vsel %vm652, %v731, 0.0
        %733 = vadd.xlane.f32.xlu0 %v732
        %v734 = vpop.xlane.xlu0 %733
        %v735 = vrcp.pop %v734
        %v736 = vmul.f32 %v731, %v735
        %v738 = vsel %vm652, %v736, 0
        %v741 = vsel %vm652, %v601, 0
        %743 = vmatprep.subr.mxu0 0.0
        %744 = vmatpush1.xpose.msra.mxu0 %v741
        %745 = vmatprep.subr.mxu0 0.0
        %746 = vmatpush1.xpose.msra.mxu0 0.0
        %747 = vmatprep.subr.mxu0 0.0
        %748 = vmatpush1.xpose.msra.mxu0 0.0
        %749 = vmatprep.subr.mxu0 0.0
        %750 = vmatpush1.xpose.msra.mxu0 0.0
        %751 = vmatprep.subr.mxu0 0.0
        %752 = vmatpush1.xpose.msra.mxu0 0.0
        %753 = vmatprep.subr.mxu0 0.0
        %754 = vmatpush1.xpose.msra.mxu0 0.0
        %755 = vmatprep.subr.mxu0 0.0
        %756 = vmatpush1.xpose.msra.mxu0 0.0
        %757 = vmatprep.subr.mxu0 0.0
        %758 = vmatpush1.xpose.msra.mxu0 0.0
        %759 = vmatprep.subr.mxu0 0.0
        %760 = vmatpush1.xpose.msra.mxu0 0.0
        %761 = vmatprep.subr.mxu0 0.0
        %762 = vmatpush1.xpose.msra.mxu0 0.0
        %763 = vmatprep.subr.mxu0 0.0
        %764 = vmatpush1.xpose.msra.mxu0 0.0
        %765 = vmatprep.subr.mxu0 0.0
        %766 = vmatpush1.xpose.msra.mxu0 0.0
        %767 = vmatprep.subr.mxu0 0.0
        %768 = vmatpush1.xpose.msra.mxu0 0.0
        %769 = vmatprep.subr.mxu0 0.0
        %770 = vmatpush1.xpose.msra.mxu0 0.0
        %771 = vmatprep.subr.mxu0 0.0
        %772 = vmatpush1.xpose.msra.mxu0 0.0
        %773 = vmatprep.subr.mxu0 0.0
        %774 = vmatpush1.xpose.msra.mxu0 0.0
        %775 = vmatprep.subr.mxu0 0.0
        %776 = vmatpush1.xpose.msra.mxu0 0.0
        %777 = vmatprep.subr.mxu0 0.0
        %778 = vmatpush1.xpose.msra.mxu0 0.0
        %779 = vmatprep.subr.mxu0 0.0
        %780 = vmatpush1.xpose.msra.mxu0 0.0
        %781 = vmatprep.subr.mxu0 0.0
        %782 = vmatpush1.xpose.msra.mxu0 0.0
        %783 = vmatprep.subr.mxu0 0.0
        %784 = vmatpush1.xpose.msra.mxu0 0.0
        %785 = vmatprep.subr.mxu0 0.0
        %786 = vmatpush1.xpose.msra.mxu0 0.0
        %787 = vmatprep.subr.mxu0 0.0
        %788 = vmatpush1.xpose.msra.mxu0 0.0
        %789 = vmatprep.subr.mxu0 0.0
        %790 = vmatpush1.xpose.msra.mxu0 0.0
        %791 = vmatprep.subr.mxu0 0.0
        %792 = vmatpush1.xpose.msra.mxu0 0.0
        %793 = vmatprep.subr.mxu0 0.0
        %794 = vmatpush1.xpose.msra.mxu0 0.0
        %795 = vmatprep.subr.mxu0 0.0
        %796 = vmatpush1.xpose.msra.mxu0 0.0
        %797 = vmatprep.subr.mxu0 0.0
        %798 = vmatpush1.xpose.msra.mxu0 0.0
        %799 = vmatprep.subr.mxu0 0.0
        %800 = vmatpush1.xpose.msra.mxu0 0.0
        %801 = vmatprep.subr.mxu0 0.0
        %802 = vmatpush1.xpose.msra.mxu0 0.0
        %803 = vmatprep.subr.mxu0 0.0
        %804 = vmatpush1.xpose.msra.mxu0 0.0
        %805 = vmatprep.subr.mxu0 0.0
        %806 = vmatpush1.xpose.msra.mxu0 0.0
        %807 = vmatprep.mubr.f32.mxu0 0.0
        %808 = vmatmul.mubr.f32.gmra.mrb[0].mxu0 %v738
        %v809 = vpop.f32.mrb[0].mxu0
        %v810 = vadd.f32 0.0, %v809
        %v811 = vpop.f32.mrb[0].mxu0
        %812 = vdwg.mxu0
        %v813 = vld [vmem:[#allocation2] sm:$0xff]
        %v814 = vld [vmem:[%s4] sm:$0xff]
        %v816 = vsel %vm652, %v810, 0
        %818 = vmatprep.subr.mxu0 0.0
        %819 = vmatpush1.msra.mxu0 %v814
        %820 = vmatprep.subr.mxu0 0.0
        %821 = vmatpush1.msra.mxu0 0.0
        %822 = vmatprep.subr.mxu0 0.0
        %823 = vmatpush1.msra.mxu0 0.0
        %824 = vmatprep.subr.mxu0 0.0
        %825 = vmatpush1.msra.mxu0 0.0
        %826 = vmatprep.subr.mxu0 0.0
        %827 = vmatpush1.msra.mxu0 0.0
        %828 = vmatprep.subr.mxu0 0.0
        %829 = vmatpush1.msra.mxu0 0.0
        %830 = vmatprep.subr.mxu0 0.0
        %831 = vmatpush1.msra.mxu0 0.0
        %832 = vmatprep.subr.mxu0 0.0
        %833 = vmatpush1.msra.mxu0 0.0
        %834 = vmatprep.subr.mxu0 0.0
        %835 = vmatpush1.msra.mxu0 0.0
        %836 = vmatprep.subr.mxu0 0.0
        %837 = vmatpush1.msra.mxu0 0.0
        %838 = vmatprep.subr.mxu0 0.0
        %839 = vmatpush1.msra.mxu0 0.0
        %840 = vmatprep.subr.mxu0 0.0
        %841 = vmatpush1.msra.mxu0 0.0
        %842 = vmatprep.subr.mxu0 0.0
        %843 = vmatpush1.msra.mxu0 0.0
        %844 = vmatprep.subr.mxu0 0.0
        %845 = vmatpush1.msra.mxu0 0.0
        %846 = vmatprep.subr.mxu0 0.0
        %847 = vmatpush1.msra.mxu0 0.0
        %848 = vmatprep.subr.mxu0 0.0
        %849 = vmatpush1.msra.mxu0 0.0
        %850 = vmatprep.subr.mxu0 0.0
        %851 = vmatpush1.msra.mxu0 0.0
        %852 = vmatprep.subr.mxu0 0.0
        %853 = vmatpush1.msra.mxu0 0.0
        %854 = vmatprep.subr.mxu0 0.0
        %855 = vmatpush1.msra.mxu0 0.0
        %856 = vmatprep.subr.mxu0 0.0
        %857 = vmatpush1.msra.mxu0 0.0
        %858 = vmatprep.subr.mxu0 0.0
        %859 = vmatpush1.msra.mxu0 0.0
        %860 = vmatprep.subr.mxu0 0.0
        %861 = vmatpush1.msra.mxu0 0.0
        %862 = vmatprep.subr.mxu0 0.0
        %863 = vmatpush1.msra.mxu0 0.0
        %864 = vmatprep.subr.mxu0 0.0
        %865 = vmatpush1.msra.mxu0 0.0
        %866 = vmatprep.subr.mxu0 0.0
        %867 = vmatpush1.msra.mxu0 0.0
        %868 = vmatprep.subr.mxu0 0.0
        %869 = vmatpush1.msra.mxu0 0.0
        %870 = vmatprep.subr.mxu0 0.0
        %871 = vmatpush1.msra.mxu0 0.0
        %872 = vmatprep.subr.mxu0 0.0
        %873 = vmatpush1.msra.mxu0 0.0
        %874 = vmatprep.subr.mxu0 0.0
        %875 = vmatpush1.msra.mxu0 0.0
        %876 = vmatprep.subr.mxu0 0.0
        %877 = vmatpush1.msra.mxu0 0.0
        %878 = vmatprep.subr.mxu0 0.0
        %879 = vmatpush1.msra.mxu0 0.0
        %880 = vmatprep.subr.mxu0 0.0
        %881 = vmatpush1.msra.mxu0 0.0
        %882 = vmatprep.mubr.f32.mxu0 0.0
        %883 = vmatmul.mubr.f32.gmra.mrb[0].mxu0 %v816
        %v884 = vpop.f32.mrb[0].mxu0
        %v885 = vadd.f32 0.0, %v884
        %v886 = vpop.f32.mrb[0].mxu0
        %887 = vdwg.mxu0
        %v888 = vadd.f32 %v813, %v885
        %889 = vst.msk [vmem:[#allocation2] sm:$0xff] %vm410, %v888
        %890 = vxpose.xlu0.b32.start [1/16] %v566, 128
        %891 = vxpose.xlu0.b32.cont [2/16] 0.0, 128
        %892 = vxpose.xlu0.b32.cont [3/16] 0.0, 128
        %893 = vxpose.xlu0.b32.cont [4/16] 0.0, 128
        %894 = vxpose.xlu0.b32.cont [5/16] 0.0, 128
        %895 = vxpose.xlu0.b32.cont [6/16] 0.0, 128
        %896 = vxpose.xlu0.b32.cont [7/16] 0.0, 128
        %897 = vxpose.xlu0.b32.cont [8/16] 0.0, 128
        %898 = vxpose.xlu0.b32.cont [9/16] 0.0, 128
        %899 = vxpose.xlu0.b32.cont [10/16] 0.0, 128
        %900 = vxpose.xlu0.b32.cont [11/16] 0.0, 128
        %901 = vxpose.xlu0.b32.cont [12/16] 0.0, 128
        %902 = vxpose.xlu0.b32.cont [13/16] 0.0, 128
        %903 = vxpose.xlu0.b32.cont [14/16] 0.0, 128
        %904 = vxpose.xlu0.b32.cont [15/16] 0.0, 128
        %905 = vxpose.xlu0.b32.end [16/16] 0.0, 128
        %v906 = vpop.trf.xlu0
        %v907 = vpop.trf.xlu0
        %v908 = vpop.trf.xlu0
        %v909 = vpop.trf.xlu0
        %v910 = vpop.trf.xlu0
        %v911 = vpop.trf.xlu0
        %v912 = vpop.trf.xlu0
        %v913 = vpop.trf.xlu0
        %v914 = vpop.trf.xlu0
        %v915 = vpop.trf.xlu0
        %v916 = vpop.trf.xlu0
        %v917 = vpop.trf.xlu0
        %v918 = vpop.trf.xlu0
        %v919 = vpop.trf.xlu0
        %v920 = vpop.trf.xlu0
        %v921 = vpop.trf.xlu0
        %v923 = vsel %vm652, %v906, 0
        %925 = vmatprep.subr.mxu0 0.0
        %926 = vmatpush1.msra.mxu0 %v586
        %927 = vmatprep.subr.mxu0 0.0
        %928 = vmatpush1.msra.mxu0 0.0
        %929 = vmatprep.subr.mxu0 0.0
        %930 = vmatpush1.msra.mxu0 0.0
        %931 = vmatprep.subr.mxu0 0.0
        %932 = vmatpush1.msra.mxu0 0.0
        %933 = vmatprep.subr.mxu0 0.0
        %934 = vmatpush1.msra.mxu0 0.0
        %935 = vmatprep.subr.mxu0 0.0
        %936 = vmatpush1.msra.mxu0 0.0
        %937 = vmatprep.subr.mxu0 0.0
        %938 = vmatpush1.msra.mxu0 0.0
        %939 = vmatprep.subr.mxu0 0.0
        %940 = vmatpush1.msra.mxu0 0.0
        %941 = vmatprep.subr.mxu0 0.0
        %942 = vmatpush1.msra.mxu0 0.0
        %943 = vmatprep.subr.mxu0 0.0
        %944 = vmatpush1.msra.mxu0 0.0
        %945 = vmatprep.subr.mxu0 0.0
        %946 = vmatpush1.msra.mxu0 0.0
        %947 = vmatprep.subr.mxu0 0.0
        %948 = vmatpush1.msra.mxu0 0.0
        %949 = vmatprep.subr.mxu0 0.0
        %950 = vmatpush1.msra.mxu0 0.0
        %951 = vmatprep.subr.mxu0 0.0
        %952 = vmatpush1.msra.mxu0 0.0
        %953 = vmatprep.subr.mxu0 0.0
        %954 = vmatpush1.msra.mxu0 0.0
        %955 = vmatprep.subr.mxu0 0.0
        %956 = vmatpush1.msra.mxu0 0.0
        %957 = vmatprep.subr.mxu0 0.0
        %958 = vmatpush1.msra.mxu0 0.0
        %959 = vmatprep.subr.mxu0 0.0
        %960 = vmatpush1.msra.mxu0 0.0
        %961 = vmatprep.subr.mxu0 0.0
        %962 = vmatpush1.msra.mxu0 0.0
        %963 = vmatprep.subr.mxu0 0.0
        %964 = vmatpush1.msra.mxu0 0.0
        %965 = vmatprep.subr.mxu0 0.0
        %966 = vmatpush1.msra.mxu0 0.0
        %967 = vmatprep.subr.mxu0 0.0
        %968 = vmatpush1.msra.mxu0 0.0
        %969 = vmatprep.subr.mxu0 0.0
        %970 = vmatpush1.msra.mxu0 0.0
        %971 = vmatprep.subr.mxu0 0.0
        %972 = vmatpush1.msra.mxu0 0.0
        %973 = vmatprep.subr.mxu0 0.0
        %974 = vmatpush1.msra.mxu0 0.0
        %975 = vmatprep.subr.mxu0 0.0
        %976 = vmatpush1.msra.mxu0 0.0
        %977 = vmatprep.subr.mxu0 0.0
        %978 = vmatpush1.msra.mxu0 0.0
        %979 = vmatprep.subr.mxu0 0.0
        %980 = vmatpush1.msra.mxu0 0.0
        %981 = vmatprep.subr.mxu0 0.0
        %982 = vmatpush1.msra.mxu0 0.0
        %983 = vmatprep.subr.mxu0 0.0
        %984 = vmatpush1.msra.mxu0 0.0
        %985 = vmatprep.subr.mxu0 0.0
        %986 = vmatpush1.msra.mxu0 0.0
        %987 = vmatprep.subr.mxu0 0.0
        %988 = vmatpush1.msra.mxu0 0.0
        %989 = vmatprep.mubr.f32.mxu0 0.0
        %990 = vmatmul.mubr.f32.gmra.mrb[0].mxu0 %v923
        %v991 = vpop.f32.mrb[0].mxu0
        %v992 = vadd.f32 0.0, %v991
        %v993 = vpop.f32.mrb[0].mxu0
        %994 = vdwg.mxu0
        %v995 = vsel %vm652, %v992, -inf
        %996 = vmax.xlane.f32.xlu0 %v995
        %v997 = vpop.xlane.xlu0 %996
        %v998 = vsub.f32 %v992, %v997
        %v999 = vmul.f32 %v998, 1.442695
        %v1000 = vpow.pop %v999
        %v1001 = vsel %vm652, %v1000, 0.0
        %1002 = vadd.xlane.f32.xlu0 %v1001
        %v1003 = vpop.xlane.xlu0 %1002
        %v1004 = vrcp.pop %v1003
        %v1005 = vmul.f32 %v1000, %v1004
        %v1007 = vsel %vm652, %v1005, 0
        %v1010 = vsel %vm652, %v606, 0
        %1012 = vmatprep.subr.mxu0 0.0
        %1013 = vmatpush1.xpose.msra.mxu0 %v1010
        %1014 = vmatprep.subr.mxu0 0.0
        %1015 = vmatpush1.xpose.msra.mxu0 0.0
        %1016 = vmatprep.subr.mxu0 0.0
        %1017 = vmatpush1.xpose.msra.mxu0 0.0
        %1018 = vmatprep.subr.mxu0 0.0
        %1019 = vmatpush1.xpose.msra.mxu0 0.0
        %1020 = vmatprep.subr.mxu0 0.0
        %1021 = vmatpush1.xpose.msra.mxu0 0.0
        %1022 = vmatprep.subr.mxu0 0.0
        %1023 = vmatpush1.xpose.msra.mxu0 0.0
        %1024 = vmatprep.subr.mxu0 0.0
        %1025 = vmatpush1.xpose.msra.mxu0 0.0
        %1026 = vmatprep.subr.mxu0 0.0
        %1027 = vmatpush1.xpose.msra.mxu0 0.0
        %1028 = vmatprep.subr.mxu0 0.0
        %1029 = vmatpush1.xpose.msra.mxu0 0.0
        %1030 = vmatprep.subr.mxu0 0.0
        %1031 = vmatpush1.xpose.msra.mxu0 0.0
        %1032 = vmatprep.subr.mxu0 0.0
        %1033 = vmatpush1.xpose.msra.mxu0 0.0
        %1034 = vmatprep.subr.mxu0 0.0
        %1035 = vmatpush1.xpose.msra.mxu0 0.0
        %1036 = vmatprep.subr.mxu0 0.0
        %1037 = vmatpush1.xpose.msra.mxu0 0.0
        %1038 = vmatprep.subr.mxu0 0.0
        %1039 = vmatpush1.xpose.msra.mxu0 0.0
        %1040 = vmatprep.subr.mxu0 0.0
        %1041 = vmatpush1.xpose.msra.mxu0 0.0
        %1042 = vmatprep.subr.mxu0 0.0
        %1043 = vmatpush1.xpose.msra.mxu0 0.0
        %1044 = vmatprep.subr.mxu0 0.0
        %1045 = vmatpush1.xpose.msra.mxu0 0.0
        %1046 = vmatprep.subr.mxu0 0.0
        %1047 = vmatpush1.xpose.msra.mxu0 0.0
        %1048 = vmatprep.subr.mxu0 0.0
        %1049 = vmatpush1.xpose.msra.mxu0 0.0
        %1050 = vmatprep.subr.mxu0 0.0
        %1051 = vmatpush1.xpose.msra.mxu0 0.0
        %1052 = vmatprep.subr.mxu0 0.0
        %1053 = vmatpush1.xpose.msra.mxu0 0.0
        %1054 = vmatprep.subr.mxu0 0.0
        %1055 = vmatpush1.xpose.msra.mxu0 0.0
        %1056 = vmatprep.subr.mxu0 0.0
        %1057 = vmatpush1.xpose.msra.mxu0 0.0
        %1058 = vmatprep.subr.mxu0 0.0
        %1059 = vmatpush1.xpose.msra.mxu0 0.0
        %1060 = vmatprep.subr.mxu0 0.0
        %1061 = vmatpush1.xpose.msra.mxu0 0.0
        %1062 = vmatprep.subr.mxu0 0.0
        %1063 = vmatpush1.xpose.msra.mxu0 0.0
        %1064 = vmatprep.subr.mxu0 0.0
        %1065 = vmatpush1.xpose.msra.mxu0 0.0
        %1066 = vmatprep.subr.mxu0 0.0
        %1067 = vmatpush1.xpose.msra.mxu0 0.0
        %1068 = vmatprep.subr.mxu0 0.0
        %1069 = vmatpush1.xpose.msra.mxu0 0.0
        %1070 = vmatprep.subr.mxu0 0.0
        %1071 = vmatpush1.xpose.msra.mxu0 0.0
        %1072 = vmatprep.subr.mxu0 0.0
        %1073 = vmatpush1.xpose.msra.mxu0 0.0
        %1074 = vmatprep.subr.mxu0 0.0
        %1075 = vmatpush1.xpose.msra.mxu0 0.0
        %1076 = vmatprep.mubr.f32.mxu0 0.0
        %1077 = vmatmul.mubr.f32.gmra.mrb[0].mxu0 %v1007
        %v1078 = vpop.f32.mrb[0].mxu0
        %v1079 = vadd.f32 0.0, %v1078
        %v1080 = vpop.f32.mrb[0].mxu0
        %1081 = vdwg.mxu0
        %v1082 = vld [vmem:[#allocation2] sm:$0xff]
        %s1083 = scalar_lea.vmem %s4, 8
        %v1084 = vld [vmem:[%s1083] sm:$0xff]
        %v1086 = vsel %vm652, %v1079, 0
        %1088 = vmatprep.subr.mxu0 0.0
        %1089 = vmatpush1.msra.mxu0 %v1084
        %1090 = vmatprep.subr.mxu0 0.0
        %1091 = vmatpush1.msra.mxu0 0.0
        %1092 = vmatprep.subr.mxu0 0.0
        %1093 = vmatpush1.msra.mxu0 0.0
        %1094 = vmatprep.subr.mxu0 0.0
        %1095 = vmatpush1.msra.mxu0 0.0
        %1096 = vmatprep.subr.mxu0 0.0
        %1097 = vmatpush1.msra.mxu0 0.0
        %1098 = vmatprep.subr.mxu0 0.0
        %1099 = vmatpush1.msra.mxu0 0.0
        %1100 = vmatprep.subr.mxu0 0.0
        %1101 = vmatpush1.msra.mxu0 0.0
        %1102 = vmatprep.subr.mxu0 0.0
        %1103 = vmatpush1.msra.mxu0 0.0
        %1104 = vmatprep.subr.mxu0 0.0
        %1105 = vmatpush1.msra.mxu0 0.0
        %1106 = vmatprep.subr.mxu0 0.0
        %1107 = vmatpush1.msra.mxu0 0.0
        %1108 = vmatprep.subr.mxu0 0.0
        %1109 = vmatpush1.msra.mxu0 0.0
        %1110 = vmatprep.subr.mxu0 0.0
        %1111 = vmatpush1.msra.mxu0 0.0
        %1112 = vmatprep.subr.mxu0 0.0
        %1113 = vmatpush1.msra.mxu0 0.0
        %1114 = vmatprep.subr.mxu0 0.0
        %1115 = vmatpush1.msra.mxu0 0.0
        %1116 = vmatprep.subr.mxu0 0.0
        %1117 = vmatpush1.msra.mxu0 0.0
        %1118 = vmatprep.subr.mxu0 0.0
        %1119 = vmatpush1.msra.mxu0 0.0
        %1120 = vmatprep.subr.mxu0 0.0
        %1121 = vmatpush1.msra.mxu0 0.0
        %1122 = vmatprep.subr.mxu0 0.0
        %1123 = vmatpush1.msra.mxu0 0.0
        %1124 = vmatprep.subr.mxu0 0.0
        %1125 = vmatpush1.msra.mxu0 0.0
        %1126 = vmatprep.subr.mxu0 0.0
        %1127 = vmatpush1.msra.mxu0 0.0
        %1128 = vmatprep.subr.mxu0 0.0
        %1129 = vmatpush1.msra.mxu0 0.0
        %1130 = vmatprep.subr.mxu0 0.0
        %1131 = vmatpush1.msra.mxu0 0.0
        %1132 = vmatprep.subr.mxu0 0.0
        %1133 = vmatpush1.msra.mxu0 0.0
        %1134 = vmatprep.subr.mxu0 0.0
        %1135 = vmatpush1.msra.mxu0 0.0
        %1136 = vmatprep.subr.mxu0 0.0
        %1137 = vmatpush1.msra.mxu0 0.0
        %1138 = vmatprep.subr.mxu0 0.0
        %1139 = vmatpush1.msra.mxu0 0.0
        %1140 = vmatprep.subr.mxu0 0.0
        %1141 = vmatpush1.msra.mxu0 0.0
        %1142 = vmatprep.subr.mxu0 0.0
        %1143 = vmatpush1.msra.mxu0 0.0
        %1144 = vmatprep.subr.mxu0 0.0
        %1145 = vmatpush1.msra.mxu0 0.0
        %1146 = vmatprep.subr.mxu0 0.0
        %1147 = vmatpush1.msra.mxu0 0.0
        %1148 = vmatprep.subr.mxu0 0.0
        %1149 = vmatpush1.msra.mxu0 0.0
        %1150 = vmatprep.subr.mxu0 0.0
        %1151 = vmatpush1.msra.mxu0 0.0
        %1152 = vmatprep.mubr.f32.mxu0 0.0
        %1153 = vmatmul.mubr.f32.gmra.mrb[0].mxu0 %v1086
        %v1154 = vpop.f32.mrb[0].mxu0
        %v1155 = vadd.f32 0.0, %v1154
        %v1156 = vpop.f32.mrb[0].mxu0
        %1157 = vdwg.mxu0
        %v1158 = vadd.f32 %v1082, %v1155
        %1159 = vst.msk [vmem:[#allocation2] sm:$0xff] %vm410, %v1158
        %1160 = vxpose.xlu0.b32.start [1/16] %v571, 128
        %1161 = vxpose.xlu0.b32.cont [2/16] 0.0, 128
        %1162 = vxpose.xlu0.b32.cont [3/16] 0.0, 128
        %1163 = vxpose.xlu0.b32.cont [4/16] 0.0, 128
        %1164 = vxpose.xlu0.b32.cont [5/16] 0.0, 128
        %1165 = vxpose.xlu0.b32.cont [6/16] 0.0, 128
        %1166 = vxpose.xlu0.b32.cont [7/16] 0.0, 128
        %1167 = vxpose.xlu0.b32.cont [8/16] 0.0, 128
        %1168 = vxpose.xlu0.b32.cont [9/16] 0.0, 128
        %1169 = vxpose.xlu0.b32.cont [10/16] 0.0, 128
        %1170 = vxpose.xlu0.b32.cont [11/16] 0.0, 128
        %1171 = vxpose.xlu0.b32.cont [12/16] 0.0, 128
        %1172 = vxpose.xlu0.b32.cont [13/16] 0.0, 128
        %1173 = vxpose.xlu0.b32.cont [14/16] 0.0, 128
        %1174 = vxpose.xlu0.b32.cont [15/16] 0.0, 128
        %1175 = vxpose.xlu0.b32.end [16/16] 0.0, 128
        %v1176 = vpop.trf.xlu0
        %v1177 = vpop.trf.xlu0
        %v1178 = vpop.trf.xlu0
        %v1179 = vpop.trf.xlu0
        %v1180 = vpop.trf.xlu0
        %v1181 = vpop.trf.xlu0
        %v1182 = vpop.trf.xlu0
        %v1183 = vpop.trf.xlu0
        %v1184 = vpop.trf.xlu0
        %v1185 = vpop.trf.xlu0
        %v1186 = vpop.trf.xlu0
        %v1187 = vpop.trf.xlu0
        %v1188 = vpop.trf.xlu0
        %v1189 = vpop.trf.xlu0
        %v1190 = vpop.trf.xlu0
        %v1191 = vpop.trf.xlu0
        %v1193 = vsel %vm652, %v1176, 0
        %1195 = vmatprep.subr.mxu0 0.0
        %1196 = vmatpush1.msra.mxu0 %v591
        %1197 = vmatprep.subr.mxu0 0.0
        %1198 = vmatpush1.msra.mxu0 0.0
        %1199 = vmatprep.subr.mxu0 0.0
        %1200 = vmatpush1.msra.mxu0 0.0
        %1201 = vmatprep.subr.mxu0 0.0
        %1202 = vmatpush1.msra.mxu0 0.0
        %1203 = vmatprep.subr.mxu0 0.0
        %1204 = vmatpush1.msra.mxu0 0.0
        %1205 = vmatprep.subr.mxu0 0.0
        %1206 = vmatpush1.msra.mxu0 0.0
        %1207 = vmatprep.subr.mxu0 0.0
        %1208 = vmatpush1.msra.mxu0 0.0
        %1209 = vmatprep.subr.mxu0 0.0
        %1210 = vmatpush1.msra.mxu0 0.0
        %1211 = vmatprep.subr.mxu0 0.0
        %1212 = vmatpush1.msra.mxu0 0.0
        %1213 = vmatprep.subr.mxu0 0.0
        %1214 = vmatpush1.msra.mxu0 0.0
        %1215 = vmatprep.subr.mxu0 0.0
        %1216 = vmatpush1.msra.mxu0 0.0
        %1217 = vmatprep.subr.mxu0 0.0
        %1218 = vmatpush1.msra.mxu0 0.0
        %1219 = vmatprep.subr.mxu0 0.0
        %1220 = vmatpush1.msra.mxu0 0.0
        %1221 = vmatprep.subr.mxu0 0.0
        %1222 = vmatpush1.msra.mxu0 0.0
        %1223 = vmatprep.subr.mxu0 0.0
        %1224 = vmatpush1.msra.mxu0 0.0
        %1225 = vmatprep.subr.mxu0 0.0
        %1226 = vmatpush1.msra.mxu0 0.0
        %1227 = vmatprep.subr.mxu0 0.0
        %1228 = vmatpush1.msra.mxu0 0.0
        %1229 = vmatprep.subr.mxu0 0.0
        %1230 = vmatpush1.msra.mxu0 0.0
        %1231 = vmatprep.subr.mxu0 0.0
        %1232 = vmatpush1.msra.mxu0 0.0
        %1233 = vmatprep.subr.mxu0 0.0
        %1234 = vmatpush1.msra.mxu0 0.0
        %1235 = vmatprep.subr.mxu0 0.0
        %1236 = vmatpush1.msra.mxu0 0.0
        %1237 = vmatprep.subr.mxu0 0.0
        %1238 = vmatpush1.msra.mxu0 0.0
        %1239 = vmatprep.subr.mxu0 0.0
        %1240 = vmatpush1.msra.mxu0 0.0
        %1241 = vmatprep.subr.mxu0 0.0
        %1242 = vmatpush1.msra.mxu0 0.0
        %1243 = vmatprep.subr.mxu0 0.0
        %1244 = vmatpush1.msra.mxu0 0.0
        %1245 = vmatprep.subr.mxu0 0.0
        %1246 = vmatpush1.msra.mxu0 0.0
        %1247 = vmatprep.subr.mxu0 0.0
        %1248 = vmatpush1.msra.mxu0 0.0
        %1249 = vmatprep.subr.mxu0 0.0
        %1250 = vmatpush1.msra.mxu0 0.0
        %1251 = vmatprep.subr.mxu0 0.0
        %1252 = vmatpush1.msra.mxu0 0.0
        %1253 = vmatprep.subr.mxu0 0.0
        %1254 = vmatpush1.msra.mxu0 0.0
        %1255 = vmatprep.subr.mxu0 0.0
        %1256 = vmatpush1.msra.mxu0 0.0
        %1257 = vmatprep.subr.mxu0 0.0
        %1258 = vmatpush1.msra.mxu0 0.0
        %1259 = vmatprep.mubr.f32.mxu0 0.0
        %1260 = vmatmul.mubr.f32.gmra.mrb[0].mxu0 %v1193
        %v1261 = vpop.f32.mrb[0].mxu0
        %v1262 = vadd.f32 0.0, %v1261
        %v1263 = vpop.f32.mrb[0].mxu0
        %1264 = vdwg.mxu0
        %v1265 = vsel %vm652, %v1262, -inf
        %1266 = vmax.xlane.f32.xlu0 %v1265
        %v1267 = vpop.xlane.xlu0 %1266
        %v1268 = vsub.f32 %v1262, %v1267
        %v1269 = vmul.f32 %v1268, 1.442695
        %v1270 = vpow.pop %v1269
        %v1271 = vsel %vm652, %v1270, 0.0
        %1272 = vadd.xlane.f32.xlu0 %v1271
        %v1273 = vpop.xlane.xlu0 %1272
        %v1274 = vrcp.pop %v1273
        %v1275 = vmul.f32 %v1270, %v1274
        %v1277 = vsel %vm652, %v1275, 0
        %v1280 = vsel %vm652, %v611, 0
        %1282 = vmatprep.subr.mxu0 0.0
        %1283 = vmatpush1.xpose.msra.mxu0 %v1280
        %1284 = vmatprep.subr.mxu0 0.0
        %1285 = vmatpush1.xpose.msra.mxu0 0.0
        %1286 = vmatprep.subr.mxu0 0.0
        %1287 = vmatpush1.xpose.msra.mxu0 0.0
        %1288 = vmatprep.subr.mxu0 0.0
        %1289 = vmatpush1.xpose.msra.mxu0 0.0
        %1290 = vmatprep.subr.mxu0 0.0
        %1291 = vmatpush1.xpose.msra.mxu0 0.0
        %1292 = vmatprep.subr.mxu0 0.0
        %1293 = vmatpush1.xpose.msra.mxu0 0.0
        %1294 = vmatprep.subr.mxu0 0.0
        %1295 = vmatpush1.xpose.msra.mxu0 0.0
        %1296 = vmatprep.subr.mxu0 0.0
        %1297 = vmatpush1.xpose.msra.mxu0 0.0
        %1298 = vmatprep.subr.mxu0 0.0
        %1299 = vmatpush1.xpose.msra.mxu0 0.0
        %1300 = vmatprep.subr.mxu0 0.0
        %1301 = vmatpush1.xpose.msra.mxu0 0.0
        %1302 = vmatprep.subr.mxu0 0.0
        %1303 = vmatpush1.xpose.msra.mxu0 0.0
        %1304 = vmatprep.subr.mxu0 0.0
        %1305 = vmatpush1.xpose.msra.mxu0 0.0
        %1306 = vmatprep.subr.mxu0 0.0
        %1307 = vmatpush1.xpose.msra.mxu0 0.0
        %1308 = vmatprep.subr.mxu0 0.0
        %1309 = vmatpush1.xpose.msra.mxu0 0.0
        %1310 = vmatprep.subr.mxu0 0.0
        %1311 = vmatpush1.xpose.msra.mxu0 0.0
        %1312 = vmatprep.subr.mxu0 0.0
        %1313 = vmatpush1.xpose.msra.mxu0 0.0
        %1314 = vmatprep.subr.mxu0 0.0
        %1315 = vmatpush1.xpose.msra.mxu0 0.0
        %1316 = vmatprep.subr.mxu0 0.0
        %1317 = vmatpush1.xpose.msra.mxu0 0.0
        %1318 = vmatprep.subr.mxu0 0.0
        %1319 = vmatpush1.xpose.msra.mxu0 0.0
        %1320 = vmatprep.subr.mxu0 0.0
        %1321 = vmatpush1.xpose.msra.mxu0 0.0
        %1322 = vmatprep.subr.mxu0 0.0
        %1323 = vmatpush1.xpose.msra.mxu0 0.0
        %1324 = vmatprep.subr.mxu0 0.0
        %1325 = vmatpush1.xpose.msra.mxu0 0.0
        %1326 = vmatprep.subr.mxu0 0.0
        %1327 = vmatpush1.xpose.msra.mxu0 0.0
        %1328 = vmatprep.subr.mxu0 0.0
        %1329 = vmatpush1.xpose.msra.mxu0 0.0
        %1330 = vmatprep.subr.mxu0 0.0
        %1331 = vmatpush1.xpose.msra.mxu0 0.0
        %1332 = vmatprep.subr.mxu0 0.0
        %1333 = vmatpush1.xpose.msra.mxu0 0.0
        %1334 = vmatprep.subr.mxu0 0.0
        %1335 = vmatpush1.xpose.msra.mxu0 0.0
        %1336 = vmatprep.subr.mxu0 0.0
        %1337 = vmatpush1.xpose.msra.mxu0 0.0
        %1338 = vmatprep.subr.mxu0 0.0
        %1339 = vmatpush1.xpose.msra.mxu0 0.0
        %1340 = vmatprep.subr.mxu0 0.0
        %1341 = vmatpush1.xpose.msra.mxu0 0.0
        %1342 = vmatprep.subr.mxu0 0.0
        %1343 = vmatpush1.xpose.msra.mxu0 0.0
        %1344 = vmatprep.subr.mxu0 0.0
        %1345 = vmatpush1.xpose.msra.mxu0 0.0
        %1346 = vmatprep.mubr.f32.mxu0 0.0
        %1347 = vmatmul.mubr.f32.gmra.mrb[0].mxu0 %v1277
        %v1348 = vpop.f32.mrb[0].mxu0
        %v1349 = vadd.f32 0.0, %v1348
        %v1350 = vpop.f32.mrb[0].mxu0
        %1351 = vdwg.mxu0
        %v1352 = vld [vmem:[#allocation2] sm:$0xff]
        %s1353 = scalar_lea.vmem %s4, 16
        %v1354 = vld [vmem:[%s1353] sm:$0xff]
        %v1356 = vsel %vm652, %v1349, 0
        %1358 = vmatprep.subr.mxu0 0.0
        %1359 = vmatpush1.msra.mxu0 %v1354
        %1360 = vmatprep.subr.mxu0 0.0
        %1361 = vmatpush1.msra.mxu0 0.0
        %1362 = vmatprep.subr.mxu0 0.0
        %1363 = vmatpush1.msra.mxu0 0.0
        %1364 = vmatprep.subr.mxu0 0.0
        %1365 = vmatpush1.msra.mxu0 0.0
        %1366 = vmatprep.subr.mxu0 0.0
        %1367 = vmatpush1.msra.mxu0 0.0
        %1368 = vmatprep.subr.mxu0 0.0
        %1369 = vmatpush1.msra.mxu0 0.0
        %1370 = vmatprep.subr.mxu0 0.0
        %1371 = vmatpush1.msra.mxu0 0.0
        %1372 = vmatprep.subr.mxu0 0.0
        %1373 = vmatpush1.msra.mxu0 0.0
        %1374 = vmatprep.subr.mxu0 0.0
        %1375 = vmatpush1.msra.mxu0 0.0
        %1376 = vmatprep.subr.mxu0 0.0
        %1377 = vmatpush1.msra.mxu0 0.0
        %1378 = vmatprep.subr.mxu0 0.0
        %1379 = vmatpush1.msra.mxu0 0.0
        %1380 = vmatprep.subr.mxu0 0.0
        %1381 = vmatpush1.msra.mxu0 0.0
        %1382 = vmatprep.subr.mxu0 0.0
        %1383 = vmatpush1.msra.mxu0 0.0
        %1384 = vmatprep.subr.mxu0 0.0
        %1385 = vmatpush1.msra.mxu0 0.0
        %1386 = vmatprep.subr.mxu0 0.0
        %1387 = vmatpush1.msra.mxu0 0.0
        %1388 = vmatprep.subr.mxu0 0.0
        %1389 = vmatpush1.msra.mxu0 0.0
        %1390 = vmatprep.subr.mxu0 0.0
        %1391 = vmatpush1.msra.mxu0 0.0
        %1392 = vmatprep.subr.mxu0 0.0
        %1393 = vmatpush1.msra.mxu0 0.0
        %1394 = vmatprep.subr.mxu0 0.0
        %1395 = vmatpush1.msra.mxu0 0.0
        %1396 = vmatprep.subr.mxu0 0.0
        %1397 = vmatpush1.msra.mxu0 0.0
        %1398 = vmatprep.subr.mxu0 0.0
        %1399 = vmatpush1.msra.mxu0 0.0
        %1400 = vmatprep.subr.mxu0 0.0
        %1401 = vmatpush1.msra.mxu0 0.0
        %1402 = vmatprep.subr.mxu0 0.0
        %1403 = vmatpush1.msra.mxu0 0.0
        %1404 = vmatprep.subr.mxu0 0.0
        %1405 = vmatpush1.msra.mxu0 0.0
        %1406 = vmatprep.subr.mxu0 0.0
        %1407 = vmatpush1.msra.mxu0 0.0
        %1408 = vmatprep.subr.mxu0 0.0
        %1409 = vmatpush1.msra.mxu0 0.0
        %1410 = vmatprep.subr.mxu0 0.0
        %1411 = vmatpush1.msra.mxu0 0.0
        %1412 = vmatprep.subr.mxu0 0.0
        %1413 = vmatpush1.msra.mxu0 0.0
        %1414 = vmatprep.subr.mxu0 0.0
        %1415 = vmatpush1.msra.mxu0 0.0
        %1416 = vmatprep.subr.mxu0 0.0
        %1417 = vmatpush1.msra.mxu0 0.0
        %1418 = vmatprep.subr.mxu0 0.0
        %1419 = vmatpush1.msra.mxu0 0.0
        %1420 = vmatprep.subr.mxu0 0.0
        %1421 = vmatpush1.msra.mxu0 0.0
        %1422 = vmatprep.mubr.f32.mxu0 0.0
        %1423 = vmatmul.mubr.f32.gmra.mrb[0].mxu0 %v1356
        %v1424 = vpop.f32.mrb[0].mxu0
        %v1425 = vadd.f32 0.0, %v1424
        %v1426 = vpop.f32.mrb[0].mxu0
        %1427 = vdwg.mxu0
        %v1428 = vadd.f32 %v1352, %v1425
        %1429 = vst.msk [vmem:[#allocation2] sm:$0xff] %vm410, %v1428
        %1430 = vxpose.xlu0.b32.start [1/16] %v576, 128
        %1431 = vxpose.xlu0.b32.cont [2/16] 0.0, 128
        %1432 = vxpose.xlu0.b32.cont [3/16] 0.0, 128
        %1433 = vxpose.xlu0.b32.cont [4/16] 0.0, 128
        %1434 = vxpose.xlu0.b32.cont [5/16] 0.0, 128
        %1435 = vxpose.xlu0.b32.cont [6/16] 0.0, 128
        %1436 = vxpose.xlu0.b32.cont [7/16] 0.0, 128
        %1437 = vxpose.xlu0.b32.cont [8/16] 0.0, 128
        %1438 = vxpose.xlu0.b32.cont [9/16] 0.0, 128
        %1439 = vxpose.xlu0.b32.cont [10/16] 0.0, 128
        %1440 = vxpose.xlu0.b32.cont [11/16] 0.0, 128
        %1441 = vxpose.xlu0.b32.cont [12/16] 0.0, 128
        %1442 = vxpose.xlu0.b32.cont [13/16] 0.0, 128
        %1443 = vxpose.xlu0.b32.cont [14/16] 0.0, 128
        %1444 = vxpose.xlu0.b32.cont [15/16] 0.0, 128
        %1445 = vxpose.xlu0.b32.end [16/16] 0.0, 128
        %v1446 = vpop.trf.xlu0
        %v1447 = vpop.trf.xlu0
        %v1448 = vpop.trf.xlu0
        %v1449 = vpop.trf.xlu0
        %v1450 = vpop.trf.xlu0
        %v1451 = vpop.trf.xlu0
        %v1452 = vpop.trf.xlu0
        %v1453 = vpop.trf.xlu0
        %v1454 = vpop.trf.xlu0
        %v1455 = vpop.trf.xlu0
        %v1456 = vpop.trf.xlu0
        %v1457 = vpop.trf.xlu0
        %v1458 = vpop.trf.xlu0
        %v1459 = vpop.trf.xlu0
        %v1460 = vpop.trf.xlu0
        %v1461 = vpop.trf.xlu0
        %v1463 = vsel %vm652, %v1446, 0
        %1465 = vmatprep.subr.mxu0 0.0
        %1466 = vmatpush1.msra.mxu0 %v596
        %1467 = vmatprep.subr.mxu0 0.0
        %1468 = vmatpush1.msra.mxu0 0.0
        %1469 = vmatprep.subr.mxu0 0.0
        %1470 = vmatpush1.msra.mxu0 0.0
        %1471 = vmatprep.subr.mxu0 0.0
        %1472 = vmatpush1.msra.mxu0 0.0
        %1473 = vmatprep.subr.mxu0 0.0
        %1474 = vmatpush1.msra.mxu0 0.0
        %1475 = vmatprep.subr.mxu0 0.0
        %1476 = vmatpush1.msra.mxu0 0.0
        %1477 = vmatprep.subr.mxu0 0.0
        %1478 = vmatpush1.msra.mxu0 0.0
        %1479 = vmatprep.subr.mxu0 0.0
        %1480 = vmatpush1.msra.mxu0 0.0
        %1481 = vmatprep.subr.mxu0 0.0
        %1482 = vmatpush1.msra.mxu0 0.0
        %1483 = vmatprep.subr.mxu0 0.0
        %1484 = vmatpush1.msra.mxu0 0.0
        %1485 = vmatprep.subr.mxu0 0.0
        %1486 = vmatpush1.msra.mxu0 0.0
        %1487 = vmatprep.subr.mxu0 0.0
        %1488 = vmatpush1.msra.mxu0 0.0
        %1489 = vmatprep.subr.mxu0 0.0
        %1490 = vmatpush1.msra.mxu0 0.0
        %1491 = vmatprep.subr.mxu0 0.0
        %1492 = vmatpush1.msra.mxu0 0.0
        %1493 = vmatprep.subr.mxu0 0.0
        %1494 = vmatpush1.msra.mxu0 0.0
        %1495 = vmatprep.subr.mxu0 0.0
        %1496 = vmatpush1.msra.mxu0 0.0
        %1497 = vmatprep.subr.mxu0 0.0
        %1498 = vmatpush1.msra.mxu0 0.0
        %1499 = vmatprep.subr.mxu0 0.0
        %1500 = vmatpush1.msra.mxu0 0.0
        %1501 = vmatprep.subr.mxu0 0.0
        %1502 = vmatpush1.msra.mxu0 0.0
        %1503 = vmatprep.subr.mxu0 0.0
        %1504 = vmatpush1.msra.mxu0 0.0
        %1505 = vmatprep.subr.mxu0 0.0
        %1506 = vmatpush1.msra.mxu0 0.0
        %1507 = vmatprep.subr.mxu0 0.0
        %1508 = vmatpush1.msra.mxu0 0.0
        %1509 = vmatprep.subr.mxu0 0.0
        %1510 = vmatpush1.msra.mxu0 0.0
        %1511 = vmatprep.subr.mxu0 0.0
        %1512 = vmatpush1.msra.mxu0 0.0
        %1513 = vmatprep.subr.mxu0 0.0
        %1514 = vmatpush1.msra.mxu0 0.0
        %1515 = vmatprep.subr.mxu0 0.0
        %1516 = vmatpush1.msra.mxu0 0.0
        %1517 = vmatprep.subr.mxu0 0.0
        %1518 = vmatpush1.msra.mxu0 0.0
        %1519 = vmatprep.subr.mxu0 0.0
        %1520 = vmatpush1.msra.mxu0 0.0
        %1521 = vmatprep.subr.mxu0 0.0
        %1522 = vmatpush1.msra.mxu0 0.0
        %1523 = vmatprep.subr.mxu0 0.0
        %1524 = vmatpush1.msra.mxu0 0.0
        %1525 = vmatprep.subr.mxu0 0.0
        %1526 = vmatpush1.msra.mxu0 0.0
        %1527 = vmatprep.subr.mxu0 0.0
        %1528 = vmatpush1.msra.mxu0 0.0
        %1529 = vmatprep.mubr.f32.mxu0 0.0
        %1530 = vmatmul.mubr.f32.gmra.mrb[0].mxu0 %v1463
        %v1531 = vpop.f32.mrb[0].mxu0
        %v1532 = vadd.f32 0.0, %v1531
        %v1533 = vpop.f32.mrb[0].mxu0
        %1534 = vdwg.mxu0
        %v1535 = vsel %vm652, %v1532, -inf
        %1536 = vmax.xlane.f32.xlu0 %v1535
        %v1537 = vpop.xlane.xlu0 %1536
        %v1538 = vsub.f32 %v1532, %v1537
        %v1539 = vmul.f32 %v1538, 1.442695
        %v1540 = vpow.pop %v1539
        %v1541 = vsel %vm652, %v1540, 0.0
        %1542 = vadd.xlane.f32.xlu0 %v1541
        %v1543 = vpop.xlane.xlu0 %1542
        %v1544 = vrcp.pop %v1543
        %v1545 = vmul.f32 %v1540, %v1544
        %v1547 = vsel %vm652, %v1545, 0
        %v1550 = vsel %vm652, %v616, 0
        %1552 = vmatprep.subr.mxu0 0.0
        %1553 = vmatpush1.xpose.msra.mxu0 %v1550
        %1554 = vmatprep.subr.mxu0 0.0
        %1555 = vmatpush1.xpose.msra.mxu0 0.0
        %1556 = vmatprep.subr.mxu0 0.0
        %1557 = vmatpush1.xpose.msra.mxu0 0.0
        %1558 = vmatprep.subr.mxu0 0.0
        %1559 = vmatpush1.xpose.msra.mxu0 0.0
        %1560 = vmatprep.subr.mxu0 0.0
        %1561 = vmatpush1.xpose.msra.mxu0 0.0
        %1562 = vmatprep.subr.mxu0 0.0
        %1563 = vmatpush1.xpose.msra.mxu0 0.0
        %1564 = vmatprep.subr.mxu0 0.0
        %1565 = vmatpush1.xpose.msra.mxu0 0.0
        %1566 = vmatprep.subr.mxu0 0.0
        %1567 = vmatpush1.xpose.msra.mxu0 0.0
        %1568 = vmatprep.subr.mxu0 0.0
        %1569 = vmatpush1.xpose.msra.mxu0 0.0
        %1570 = vmatprep.subr.mxu0 0.0
        %1571 = vmatpush1.xpose.msra.mxu0 0.0
        %1572 = vmatprep.subr.mxu0 0.0
        %1573 = vmatpush1.xpose.msra.mxu0 0.0
        %1574 = vmatprep.subr.mxu0 0.0
        %1575 = vmatpush1.xpose.msra.mxu0 0.0
        %1576 = vmatprep.subr.mxu0 0.0
        %1577 = vmatpush1.xpose.msra.mxu0 0.0
        %1578 = vmatprep.subr.mxu0 0.0
        %1579 = vmatpush1.xpose.msra.mxu0 0.0
        %1580 = vmatprep.subr.mxu0 0.0
        %1581 = vmatpush1.xpose.msra.mxu0 0.0
        %1582 = vmatprep.subr.mxu0 0.0
        %1583 = vmatpush1.xpose.msra.mxu0 0.0
        %1584 = vmatprep.subr.mxu0 0.0
        %1585 = vmatpush1.xpose.msra.mxu0 0.0
        %1586 = vmatprep.subr.mxu0 0.0
        %1587 = vmatpush1.xpose.msra.mxu0 0.0
        %1588 = vmatprep.subr.mxu0 0.0
        %1589 = vmatpush1.xpose.msra.mxu0 0.0
        %1590 = vmatprep.subr.mxu0 0.0
        %1591 = vmatpush1.xpose.msra.mxu0 0.0
        %1592 = vmatprep.subr.mxu0 0.0
        %1593 = vmatpush1.xpose.msra.mxu0 0.0
        %1594 = vmatprep.subr.mxu0 0.0
        %1595 = vmatpush1.xpose.msra.mxu0 0.0
        %1596 = vmatprep.subr.mxu0 0.0
        %1597 = vmatpush1.xpose.msra.mxu0 0.0
        %1598 = vmatprep.subr.mxu0 0.0
        %1599 = vmatpush1.xpose.msra.mxu0 0.0
        %1600 = vmatprep.subr.mxu0 0.0
        %1601 = vmatpush1.xpose.msra.mxu0 0.0
        %1602 = vmatprep.subr.mxu0 0.0
        %1603 = vmatpush1.xpose.msra.mxu0 0.0
        %1604 = vmatprep.subr.mxu0 0.0
        %1605 = vmatpush1.xpose.msra.mxu0 0.0
        %1606 = vmatprep.subr.mxu0 0.0
        %1607 = vmatpush1.xpose.msra.mxu0 0.0
        %1608 = vmatprep.subr.mxu0 0.0
        %1609 = vmatpush1.xpose.msra.mxu0 0.0
        %1610 = vmatprep.subr.mxu0 0.0
        %1611 = vmatpush1.xpose.msra.mxu0 0.0
        %1612 = vmatprep.subr.mxu0 0.0
        %1613 = vmatpush1.xpose.msra.mxu0 0.0
        %1614 = vmatprep.subr.mxu0 0.0
        %1615 = vmatpush1.xpose.msra.mxu0 0.0
        %1616 = vmatprep.mubr.f32.mxu0 0.0
        %1617 = vmatmul.mubr.f32.gmra.mrb[0].mxu0 %v1547
        %v1618 = vpop.f32.mrb[0].mxu0
        %v1619 = vadd.f32 0.0, %v1618
        %v1620 = vpop.f32.mrb[0].mxu0
        %1621 = vdwg.mxu0
        %v1622 = vld [vmem:[#allocation2] sm:$0xff]
        %s1623 = scalar_lea.vmem %s4, 24
        %v1624 = vld [vmem:[%s1623] sm:$0xff]
        %v1626 = vsel %vm652, %v1619, 0
        %1628 = vmatprep.subr.mxu0 0.0
        %1629 = vmatpush1.msra.mxu0 %v1624
        %1630 = vmatprep.subr.mxu0 0.0
        %1631 = vmatpush1.msra.mxu0 0.0
        %1632 = vmatprep.subr.mxu0 0.0
        %1633 = vmatpush1.msra.mxu0 0.0
        %1634 = vmatprep.subr.mxu0 0.0
        %1635 = vmatpush1.msra.mxu0 0.0
        %1636 = vmatprep.subr.mxu0 0.0
        %1637 = vmatpush1.msra.mxu0 0.0
        %1638 = vmatprep.subr.mxu0 0.0
        %1639 = vmatpush1.msra.mxu0 0.0
        %1640 = vmatprep.subr.mxu0 0.0
        %1641 = vmatpush1.msra.mxu0 0.0
        %1642 = vmatprep.subr.mxu0 0.0
        %1643 = vmatpush1.msra.mxu0 0.0
        %1644 = vmatprep.subr.mxu0 0.0
        %1645 = vmatpush1.msra.mxu0 0.0
        %1646 = vmatprep.subr.mxu0 0.0
        %1647 = vmatpush1.msra.mxu0 0.0
        %1648 = vmatprep.subr.mxu0 0.0
        %1649 = vmatpush1.msra.mxu0 0.0
        %1650 = vmatprep.subr.mxu0 0.0
        %1651 = vmatpush1.msra.mxu0 0.0
        %1652 = vmatprep.subr.mxu0 0.0
        %1653 = vmatpush1.msra.mxu0 0.0
        %1654 = vmatprep.subr.mxu0 0.0
        %1655 = vmatpush1.msra.mxu0 0.0
        %1656 = vmatprep.subr.mxu0 0.0
        %1657 = vmatpush1.msra.mxu0 0.0
        %1658 = vmatprep.subr.mxu0 0.0
        %1659 = vmatpush1.msra.mxu0 0.0
        %1660 = vmatprep.subr.mxu0 0.0
        %1661 = vmatpush1.msra.mxu0 0.0
        %1662 = vmatprep.subr.mxu0 0.0
        %1663 = vmatpush1.msra.mxu0 0.0
        %1664 = vmatprep.subr.mxu0 0.0
        %1665 = vmatpush1.msra.mxu0 0.0
        %1666 = vmatprep.subr.mxu0 0.0
        %1667 = vmatpush1.msra.mxu0 0.0
        %1668 = vmatprep.subr.mxu0 0.0
        %1669 = vmatpush1.msra.mxu0 0.0
        %1670 = vmatprep.subr.mxu0 0.0
        %1671 = vmatpush1.msra.mxu0 0.0
        %1672 = vmatprep.subr.mxu0 0.0
        %1673 = vmatpush1.msra.mxu0 0.0
        %1674 = vmatprep.subr.mxu0 0.0
        %1675 = vmatpush1.msra.mxu0 0.0
        %1676 = vmatprep.subr.mxu0 0.0
        %1677 = vmatpush1.msra.mxu0 0.0
        %1678 = vmatprep.subr.mxu0 0.0
        %1679 = vmatpush1.msra.mxu0 0.0
        %1680 = vmatprep.subr.mxu0 0.0
        %1681 = vmatpush1.msra.mxu0 0.0
        %1682 = vmatprep.subr.mxu0 0.0
        %1683 = vmatpush1.msra.mxu0 0.0
        %1684 = vmatprep.subr.mxu0 0.0
        %1685 = vmatpush1.msra.mxu0 0.0
        %1686 = vmatprep.subr.mxu0 0.0
        %1687 = vmatpush1.msra.mxu0 0.0
        %1688 = vmatprep.subr.mxu0 0.0
        %1689 = vmatpush1.msra.mxu0 0.0
        %1690 = vmatprep.subr.mxu0 0.0
        %1691 = vmatpush1.msra.mxu0 0.0
        %1692 = vmatprep.mubr.f32.mxu0 0.0
        %1693 = vmatmul.mubr.f32.gmra.mrb[0].mxu0 %v1626
        %v1694 = vpop.f32.mrb[0].mxu0
        %v1695 = vadd.f32 0.0, %v1694
        %v1696 = vpop.f32.mrb[0].mxu0
        %1697 = vdwg.mxu0
        %v1698 = vadd.f32 %v1622, %v1695
        %1699 = vst.msk [vmem:[#allocation2] sm:$0xff] %vm410, %v1698
        %v1700 = vld [vmem:[#allocation2] sm:$0xff]
        %v1701 = vadd.f32 %v409, %v1700
        %v1702 = vld [vmem:[%s5] sm:$0x1]
        %v1704 = vlaneseq
        %v1705 = vshrl.u32 %v1704, 7
        %v1706 = vsub.s32 0, %v1705
        %v1707 = vrot.slane %v1702, %v1706
        %v1709 = vadd.f32 %v1701, %v1707
        %v1710 = vsel %vm410, %v1709, 0.0
        %1711 = vadd.xlane.f32.xlu0 %v1710
        %v1712 = vpop.xlane.xlu0 %1711
        %v1713 = vmul.f32 %v1712, %v414
        %v1714 = vmul.f32 %v1709, %v1709
        %v1715 = vsel %vm410, %v1714, 0.0
        %1716 = vadd.xlane.f32.xlu0 %v1715
        %v1717 = vpop.xlane.xlu0 %1716
        %v1718 = vmul.f32 %v1717, %v414
        %v1719 = vmul.f32 %v1713, %v1713
        %v1720 = vsub.f32 %v1718, %v1719
        %v1721 = vsub.f32 %v1709, %v1713
        %v1722 = vadd.f32 %v1720, 1e-05
        %v1723 = vrsqrt.pop %v1722
        %v1724 = vmul.f32 %v1721, %v1723
        %v1725 = vld [vmem:[%s6] sm:$0x1]
        %v1727 = vlaneseq
        %v1728 = vshrl.u32 %v1727, 7
        %v1729 = vsub.s32 0, %v1728
        %v1730 = vrot.slane %v1725, %v1729
        %v1732 = vmul.f32 %v1724, %v1730
        %v1733 = vld [vmem:[%s7] sm:$0x1]
        %v1735 = vlaneseq
        %v1736 = vshrl.u32 %v1735, 7
        %v1737 = vsub.s32 0, %v1736
        %v1738 = vrot.slane %v1733, %v1737
        %v1740 = vadd.f32 %v1732, %v1738
        %v1741 = vld [vmem:[%s8] sm:$0xff]
        %v1742 = vld [vmem:[%s8 + $0x8] sm:$0xff]
        %v1743 = vld [vmem:[%s8 + $0x10] sm:$0xff]
        %v1744 = vld [vmem:[%s8 + $0x18] sm:$0xff]
        %v1745 = vld [vmem:[%s9] sm:$0x1]
        %v1747 = vlaneseq
        %v1748 = vshrl.u32 %v1747, 7
        %v1749 = vsub.s32 0, %v1748
        %v1750 = vrot.slane %v1745, %v1749
        %v1753 = vsel %vm410, %v1740, 0
        %1755 = vmatprep.subr.mxu0 0.0
        %1756 = vmatpush1.msra.mxu0 %v1741
        %1757 = vmatprep.subr.mxu0 0.0
        %1758 = vmatpush1.msra.mxu0 %v1742
        %1759 = vmatprep.subr.mxu0 0.0
        %1760 = vmatpush1.msra.mxu0 %v1743
        %1761 = vmatprep.subr.mxu0 0.0
        %1762 = vmatpush1.msra.mxu0 %v1744
        %1763 = vmatprep.subr.mxu0 0.0
        %1764 = vmatpush1.msra.mxu0 0.0
        %1765 = vmatprep.subr.mxu0 0.0
        %1766 = vmatpush1.msra.mxu0 0.0
        %1767 = vmatprep.subr.mxu0 0.0
        %1768 = vmatpush1.msra.mxu0 0.0
        %1769 = vmatprep.subr.mxu0 0.0
        %1770 = vmatpush1.msra.mxu0 0.0
        %1771 = vmatprep.subr.mxu0 0.0
        %1772 = vmatpush1.msra.mxu0 0.0
        %1773 = vmatprep.subr.mxu0 0.0
        %1774 = vmatpush1.msra.mxu0 0.0
        %1775 = vmatprep.subr.mxu0 0.0
        %1776 = vmatpush1.msra.mxu0 0.0
        %1777 = vmatprep.subr.mxu0 0.0
        %1778 = vmatpush1.msra.mxu0 0.0
        %1779 = vmatprep.subr.mxu0 0.0
        %1780 = vmatpush1.msra.mxu0 0.0
        %1781 = vmatprep.subr.mxu0 0.0
        %1782 = vmatpush1.msra.mxu0 0.0
        %1783 = vmatprep.subr.mxu0 0.0
        %1784 = vmatpush1.msra.mxu0 0.0
        %1785 = vmatprep.subr.mxu0 0.0
        %1786 = vmatpush1.msra.mxu0 0.0
        %1787 = vmatprep.subr.mxu0 0.0
        %1788 = vmatpush1.msra.mxu0 0.0
        %1789 = vmatprep.subr.mxu0 0.0
        %1790 = vmatpush1.msra.mxu0 0.0
        %1791 = vmatprep.subr.mxu0 0.0
        %1792 = vmatpush1.msra.mxu0 0.0
        %1793 = vmatprep.subr.mxu0 0.0
        %1794 = vmatpush1.msra.mxu0 0.0
        %1795 = vmatprep.subr.mxu0 0.0
        %1796 = vmatpush1.msra.mxu0 0.0
        %1797 = vmatprep.subr.mxu0 0.0
        %1798 = vmatpush1.msra.mxu0 0.0
        %1799 = vmatprep.subr.mxu0 0.0
        %1800 = vmatpush1.msra.mxu0 0.0
        %1801 = vmatprep.subr.mxu0 0.0
        %1802 = vmatpush1.msra.mxu0 0.0
        %1803 = vmatprep.subr.mxu0 0.0
        %1804 = vmatpush1.msra.mxu0 0.0
        %1805 = vmatprep.subr.mxu0 0.0
        %1806 = vmatpush1.msra.mxu0 0.0
        %1807 = vmatprep.subr.mxu0 0.0
        %1808 = vmatpush1.msra.mxu0 0.0
        %1809 = vmatprep.subr.mxu0 0.0
        %1810 = vmatpush1.msra.mxu0 0.0
        %1811 = vmatprep.subr.mxu0 0.0
        %1812 = vmatpush1.msra.mxu0 0.0
        %1813 = vmatprep.subr.mxu0 0.0
        %1814 = vmatpush1.msra.mxu0 0.0
        %1815 = vmatprep.subr.mxu0 0.0
        %1816 = vmatpush1.msra.mxu0 0.0
        %1817 = vmatprep.subr.mxu0 0.0
        %1818 = vmatpush1.msra.mxu0 0.0
        %1819 = vmatprep.mubr.f32.mxu0 0.0
        %1820 = vmatmul.mubr.f32.gmra.mrb[0].mxu0 %v1753
        %v1821 = vpop.f32.mrb[0].mxu0
        %v1822 = vadd.f32 %v1750, %v1821
        %v1823 = vpop.f32.mrb[0].mxu0
        %1824 = vdwg.mxu0
        %v1825 = vmul.f32 %v1822, 0.5
        %v1826 = vmul.f32 %v1822, 0.70710677
        %v1827 = verf.f32.pop %v1826
        %v1828 = vadd.f32 %v1827, 1.0
        %v1829 = vmul.f32 %v1825, %v1828
        %v1830 = vld [vmem:[%s10] sm:$0xff]
        %v1831 = vld [vmem:[%s10 + $0x8] sm:$0xff]
        %v1832 = vld [vmem:[%s10 + $0x10] sm:$0xff]
        %v1833 = vld [vmem:[%s10 + $0x18] sm:$0xff]
        %v1834 = vld [vmem:[%s10 + $0x20] sm:$0xff]
        %v1835 = vld [vmem:[%s10 + $0x28] sm:$0xff]
        %v1836 = vld [vmem:[%s10 + $0x30] sm:$0xff]
        %v1837 = vld [vmem:[%s10 + $0x38] sm:$0xff]
        %v1838 = vld [vmem:[%s10 + $0x40] sm:$0xff]
        %v1839 = vld [vmem:[%s10 + $0x48] sm:$0xff]
        %v1840 = vld [vmem:[%s10 + $0x50] sm:$0xff]
        %v1841 = vld [vmem:[%s10 + $0x58] sm:$0xff]
        %v1842 = vld [vmem:[%s10 + $0x60] sm:$0xff]
        %v1843 = vld [vmem:[%s10 + $0x68] sm:$0xff]
        %v1844 = vld [vmem:[%s10 + $0x70] sm:$0xff]
        %v1845 = vld [vmem:[%s10 + $0x78] sm:$0xff]
        %v1846 = vld [vmem:[%s11] sm:$0x1]
        %v1848 = vlaneseq
        %v1849 = vshrl.u32 %v1848, 7
        %v1850 = vsub.s32 0, %v1849
        %v1851 = vrot.slane %v1846, %v1850
        %1853 = vmatprep.subr.mxu0 0.0
        %1854 = vmatpush1.msra.mxu0 %v1830
        %1855 = vmatprep.subr.mxu0 0.0
        %1856 = vmatpush1.msra.mxu0 %v1831
        %1857 = vmatprep.subr.mxu0 0.0
        %1858 = vmatpush1.msra.mxu0 %v1832
        %1859 = vmatprep.subr.mxu0 0.0
        %1860 = vmatpush1.msra.mxu0 %v1833
        %1861 = vmatprep.subr.mxu0 0.0
        %1862 = vmatpush1.msra.mxu0 %v1834
        %1863 = vmatprep.subr.mxu0 0.0
        %1864 = vmatpush1.msra.mxu0 %v1835
        %1865 = vmatprep.subr.mxu0 0.0
        %1866 = vmatpush1.msra.mxu0 %v1836
        %1867 = vmatprep.subr.mxu0 0.0
        %1868 = vmatpush1.msra.mxu0 %v1837
        %1869 = vmatprep.subr.mxu0 0.0
        %1870 = vmatpush1.msra.mxu0 %v1838
        %1871 = vmatprep.subr.mxu0 0.0
        %1872 = vmatpush1.msra.mxu0 %v1839
        %1873 = vmatprep.subr.mxu0 0.0
        %1874 = vmatpush1.msra.mxu0 %v1840
        %1875 = vmatprep.subr.mxu0 0.0
        %1876 = vmatpush1.msra.mxu0 %v1841
        %1877 = vmatprep.subr.mxu0 0.0
        %1878 = vmatpush1.msra.mxu0 %v1842
        %1879 = vmatprep.subr.mxu0 0.0
        %1880 = vmatpush1.msra.mxu0 %v1843
        %1881 = vmatprep.subr.mxu0 0.0
        %1882 = vmatpush1.msra.mxu0 %v1844
        %1883 = vmatprep.subr.mxu0 0.0
        %1884 = vmatpush1.msra.mxu0 %v1845
        %1885 = vmatprep.subr.mxu0 0.0
        %1886 = vmatpush1.msra.mxu0 0.0
        %1887 = vmatprep.subr.mxu0 0.0
        %1888 = vmatpush1.msra.mxu0 0.0
        %1889 = vmatprep.subr.mxu0 0.0
        %1890 = vmatpush1.msra.mxu0 0.0
        %1891 = vmatprep.subr.mxu0 0.0
        %1892 = vmatpush1.msra.mxu0 0.0
        %1893 = vmatprep.subr.mxu0 0.0
        %1894 = vmatpush1.msra.mxu0 0.0
        %1895 = vmatprep.subr.mxu0 0.0
        %1896 = vmatpush1.msra.mxu0 0.0
        %1897 = vmatprep.subr.mxu0 0.0
        %1898 = vmatpush1.msra.mxu0 0.0
        %1899 = vmatprep.subr.mxu0 0.0
        %1900 = vmatpush1.msra.mxu0 0.0
        %1901 = vmatprep.subr.mxu0 0.0
        %1902 = vmatpush1.msra.mxu0 0.0
        %1903 = vmatprep.subr.mxu0 0.0
        %1904 = vmatpush1.msra.mxu0 0.0
        %1905 = vmatprep.subr.mxu0 0.0
        %1906 = vmatpush1.msra.mxu0 0.0
        %1907 = vmatprep.subr.mxu0 0.0
        %1908 = vmatpush1.msra.mxu0 0.0
        %1909 = vmatprep.subr.mxu0 0.0
        %1910 = vmatpush1.msra.mxu0 0.0
        %1911 = vmatprep.subr.mxu0 0.0
        %1912 = vmatpush1.msra.mxu0 0.0
        %1913 = vmatprep.subr.mxu0 0.0
        %1914 = vmatpush1.msra.mxu0 0.0
        %1915 = vmatprep.subr.mxu0 0.0
        %1916 = vmatpush1.msra.mxu0 0.0
        %1917 = vmatprep.mubr.f32.mxu0 0.0
        %1918 = vmatmul.mubr.f32.gmra.mrb[0].mxu0 %v1829
        %v1919 = vpop.f32.mrb[0].mxu0
        %v1920 = vadd.f32 %v1851, %v1919
        %v1921 = vpop.f32.mrb[0].mxu0
        %1922 = vdwg.mxu0
        %v1923 = vadd.f32 %v1709, %v1920
        %1924 = vst.msk [vmem:[%s404] sm:$0xff] %vm410, %v1923
        %s1925 = sand.u32 %s291, 1
        %s1926 = scalar_lea.sflag [#allocation4], %s1925
        %s1927 = sand.u32 %s291, 1
        %s1928 = smul.addr %s1927, 8
        %s1929 = scalar_lea.vmem [#allocation3], %s1928
        // Predicated region
        $region69: #{tpu_custom_call.1} parent=67 // pred_check
          %p1930 = pneg %p301
        $region70: #{tpu_custom_call.1} parent=67 // pred_check_branch
          %1932 = sbr.rel (%p1930) target = $region72
        $region71: #{tpu_custom_call.1} parent=67 // pred_region
          %s1934 = ssub.s32 128, 128
          %1935 = vsyncadd %s1926, %s1934
          %s1936 = smul.addr %s26, 128
          %s1937 = scalar_lea.hbm %s12, %s1936
          %s1939 = sshll.u32 %s1929, 4
          %s1940 = int_to_ptr.vmem [resolvable:$true] %s1939
          %1942 = dma.vmem_to_hbm [thread:$0]  %s1940, 128, %s1937, %s1926
        $region72: #{tpu_custom_call.1} parent=67 // pred_fallthru
          _
      $region68: #{tpu_custom_call.1} parent=5 // pred_fallthru
        _
      %p1943 = scmp.le.s32.totalorder 2, %s21
      // Predicated region
      $region73: #{tpu_custom_call.1} parent=5 // pred_check
        %p1944 = pneg %p1943
      $region74: #{tpu_custom_call.1} parent=5 // pred_check_branch
        %1946 = sbr.rel (%p1944) target = $region76
      $region75: #{tpu_custom_call.1} parent=5 // pred_region
        %s1947 = ssub.s32 %s21, 2
        // Predicated region
        $region77: #{tpu_custom_call.1} parent=75 // pred_check
          %p1948 = pneg %p307
        $region78: #{tpu_custom_call.1} parent=75 // pred_check_branch
          %1950 = sbr.rel (%p1948) target = $region80
        $region79: #{tpu_custom_call.1} parent=75 // pred_region
          %s1951 = sand.u32 %s292, 1
          %s1952 = scalar_lea.sflag [#allocation4], %s1951
          %s1953 = sand.u32 %s292, 1
          %s1954 = smul.addr %s1953, 8
          %s1955 = scalar_lea.vmem [#allocation3], %s1954
          %1956 = dma.done %s1952, 128
        $region80: #{tpu_custom_call.1} parent=75 // pred_fallthru
          _
      $region76: #{tpu_custom_call.1} parent=5 // pred_fallthru
        _
    $region6: #{tpu_custom_call.1} parent=1 // loop_footer
      %s25 = sadd.s32 1, %s21
    $region7: #{tpu_custom_call.1} parent=1 // loop_footer_branch
      %20 = sbr.rel target = $region3
    $region8: #{tpu_custom_call.1} parent=1 // loop_exit
      _
    %1957 = vsyncpa [#allocation4], 1
    %s1958 = scalar_lea.sflag [#allocation4], 1
    %1959 = vsyncpa %s1958, 1

</llo_original>
